<compile_context>
chip_gen: v7x
topology: tpu7x:2x2x1
jax: 0.10.0
libtpu: 0.0.40
codegen_flags: <defaults>
</compile_context>

<pallas_src>
import numpy as np
import jax
import jax.numpy as jnp
from jax.experimental import pallas as pl
from jax.experimental.pallas import tpu as pltpu


def _asm_kernel(u_ref, fx_ref, fy_ref, hr_ref, hi_ref, ify_ref, ifx_ref, o_ref):
    """Propagates ONE image per grid step.

    u_ref / o_ref : (1, 2*Ny, Nx) f32 -- re rows stacked on top of im rows.
    fx_ref/ifx_ref: (Nx, 2*Nx)        -- [Re | Im] of the (inverse) x-DFT matrix.
    fy_ref/ify_ref: (2*Ny, Ny)        -- [Re ; Im] of the (inverse) y-DFT matrix.
    hr_ref/hi_ref : (Ny, Nx) f32      -- Re / Im of the ASM transfer function H.

    All matmuls are plain 2-D MXU dots with f32 accumulation; no field-sized
    concatenate / relayout copies are ever materialized inside the kernel.
    """
    Ny, Nx = hr_ref.shape
    cdt = fx_ref.dtype                       # MXU operand dtype (bf16 or f32)
    f32 = jnp.float32

    # ---- x-axis forward DFT: one stacked real matmul (M = 2*Ny) ----
    s = u_ref[0].astype(cdt)                                            # (2Ny, Nx)
    m1 = jnp.dot(s, fx_ref[...], preferred_element_type=f32)            # (2Ny, 2Nx)
    wr = m1[:Ny, :Nx] - m1[Ny:, Nx:]                                    # Re(fft_x u)
    wi = m1[:Ny, Nx:] + m1[Ny:, :Nx]                                    # Im(fft_x u)

    # ---- y-axis forward DFT: two matmuls (M = 2*Ny, K = Ny) ----
    ar = jnp.dot(fy_ref[...], wr.astype(cdt), preferred_element_type=f32)  # (2Ny, Nx)
    ai = jnp.dot(fy_ref[...], wi.astype(cdt), preferred_element_type=f32)
    # Complex combine fused directly with the transfer-function multiply (f32 VPU);
    # u1r / u1i are never stored as separate staged buffers.
    u1r = ar[:Ny] - ai[Ny:]
    u1i = ai[:Ny] + ar[Ny:]
    hr = hr_ref[...]
    hi = hi_ref[...]
    u2r = u1r * hr - u1i * hi
    u2i = u1r * hi + u1i * hr

    # ---- y-axis inverse DFT (unnormalized) ----
    cr = jnp.dot(ify_ref[...], u2r.astype(cdt), preferred_element_type=f32)
    ci = jnp.dot(ify_ref[...], u2i.astype(cdt), preferred_element_type=f32)
    br = cr[:Ny] - ci[Ny:]
    bi = ci[:Ny] + cr[Ny:]

    # ---- x-axis inverse DFT (unnormalized) ----
    dr = jnp.dot(br.astype(cdt), ifx_ref[...], preferred_element_type=f32)  # (Ny, 2Nx)
    di = jnp.dot(bi.astype(cdt), ifx_ref[...], preferred_element_type=f32)

    # 1/(Ny*Nx) inverse-FFT normalization applied here in f32 (kept out of the
    # possibly-bf16 inverse DFT matrices).  Lane-dense stores: last dim = Nx.
    scale = 1.0 / (Ny * Nx)
    o_ref[0, :Ny, :] = (dr[:, :Nx] - di[:, Nx:]) * scale
    o_ref[0, Ny:, :] = (di[:, :Nx] + dr[:, Nx:]) * scale


def make_asm_buffers(feature_size, wavelength, z, img_shape, *,
                     compute_dtype=jnp.bfloat16):
    """Deterministic constants: transfer function H + re/im-stacked (i)DFT mats.

    compute_dtype sets the MXU operand dtype (bf16 is MXU-native on v5e/v6e/v7x
    and the default; accumulation is always f32).  H stays float32 and is
    stored ONCE at (Ny, Nx) -- never tiled by batch.  The inverse DFT matrices
    carry NO 1/N scale; normalization is applied in f32 inside the kernel.
    """
    num_y, num_x = img_shape
    fy = np.fft.fftfreq(num_y, d=feature_size)
    fx = np.fft.fftfreq(num_x, d=feature_size)
    FY, FX = np.meshgrid(fy, fx, indexing="ij")
    k = 2.0 * np.pi / wavelength
    sqrt_arg = np.clip(1.0 - wavelength ** 2 * (FX ** 2 + FY ** 2), 0.0, None)
    phase = k * z * np.sqrt(sqrt_arg)                     # (Ny, Nx) float64
    h_re = np.cos(phase).astype(np.float32)               # cos/sin in f64, store f32
    h_im = np.sin(phase).astype(np.float32)

    def dft(n, sign):
        idx = np.arange(n)
        ang = sign * 2.0 * np.pi * np.outer(idx, idx) / n
        return np.cos(ang), np.sin(ang)

    fx_re, fx_im = dft(num_x, -1.0)
    fy_re, fy_im = dft(num_y, -1.0)
    ifx_re, ifx_im = dft(num_x, +1.0)      # unnormalized; 1/(Nx*Ny) applied in-kernel
    ify_re, ify_im = dft(num_y, +1.0)

    # Re/im-stacked constants (stacking done here, on the host, never in-kernel).
    fx_st = np.concatenate([fx_re, fx_im], axis=1)        # (Nx, 2Nx)  RHS, x-DFT
    ifx_st = np.concatenate([ifx_re, ifx_im], axis=1)     # (Nx, 2Nx)  RHS, x-iDFT
    fy_st = np.concatenate([fy_re, fy_im], axis=0)        # (2Ny, Ny)  LHS, y-DFT
    ify_st = np.concatenate([ify_re, ify_im], axis=0)     # (2Ny, Ny)  LHS, y-iDFT

    return (jnp.asarray(fx_st, dtype=compute_dtype),
            jnp.asarray(fy_st, dtype=compute_dtype),
            jnp.asarray(h_re),
            jnp.asarray(h_im),
            jnp.asarray(ify_st, dtype=compute_dtype),
            jnp.asarray(ifx_st, dtype=compute_dtype))


def asm_propagate(u_re, u_im, buffers):
    """u_re / u_im: (B, Ny, Nx) float32.  Returns (out_re, out_im), same shape."""
    B, Ny, Nx = u_re.shape
    fx_st, fy_st, h_re, h_im, ify_st, ifx_st = buffers
    assert h_re.shape == (Ny, Nx)
    # Lane/sublane-friendly layout: Nx a multiple of 128 lanes; the im half of
    # the stacked field starts at row Ny, which must sit on an 8-row sublane tile.
    assert Nx % 128 == 0 and Ny % 8 == 0, "require Nx % 128 == 0 and Ny % 8 == 0"

    # All re/im staging happens here in the wrapper: the field enters the kernel
    # pre-stacked (re rows on top of im rows) and the output comes back stacked.
    u_st = jnp.concatenate([u_re, u_im], axis=1)           # (B, 2Ny, Nx)

    field_spec = pl.BlockSpec((1, 2 * Ny, Nx), lambda b: (b, 0, 0))

    def const_spec(a):
        # Constant block index -> DMA'd once, not re-fetched per grid step.
        # TODO(synk): single-buffer these (pipeline_mode=pl.Buffered(1) or a
        #             one-shot DMA into VMEM scratch) to halve their VMEM
        #             residency at production Ny/Nx on v7x's 64 MiB VMEM.
        return pl.BlockSpec(a.shape, lambda b: (0, 0))

    out_st = pl.pallas_call(
        _asm_kernel,
        out_shape=jax.ShapeDtypeStruct((B, 2 * Ny, Nx), jnp.float32),
        grid_spec=pltpu.PrefetchScalarGridSpec(
            num_scalar_prefetch=0,
            grid=(B,),                      # one image per step: >=2 parallel steps
            in_specs=[field_spec,
                      const_spec(fx_st), const_spec(fy_st),
                      const_spec(h_re), const_spec(h_im),
                      const_spec(ify_st), const_spec(ifx_st)],
            out_specs=field_spec,
        ),
        compiler_params=pltpu.CompilerParams(
            dimension_semantics=("parallel",),         # v7x: images over both TCs
            vmem_limit_bytes=48 * 1024 * 1024),        # headroom under v7x's 64 MiB
    )(u_st, fx_st, fy_st, h_re, h_im, ify_st, ifx_st)

    return out_st[:, :Ny, :], out_st[:, Ny:, :]


if __name__ == "__main__":
    feature_size = 6.4e-6        # pixel pitch [m]
    wavelength = 520e-9          # [m]
    z = 1.0e-3                   # propagation distance [m]
    # Ny = Nx = 128: lane-dense (last dim one full 128-lane group) and MXU-friendly
    # (M = 2*Ny = 256, K = 128 for every dot in the kernel).
    img_shape = (128, 128)
    B = 2

    key = jax.random.PRNGKey(0)
    k1, k2 = jax.random.split(key)
    u_re = jax.random.normal(k1, (B,) + img_shape, dtype=jnp.float32)
    u_im = jax.random.normal(k2, (B,) + img_shape, dtype=jnp.float32)

    # float64 reference with the same semantics as the PyTorch module.
    num_y, num_x = img_shape
    fyv = np.fft.fftfreq(num_y, d=feature_size)
    fxv = np.fft.fftfreq(num_x, d=feature_size)
    FY, FX = np.meshgrid(fyv, fxv, indexing="ij")
    kk = 2.0 * np.pi / wavelength
    phase = kk * z * np.sqrt(
        np.clip(1.0 - wavelength ** 2 * (FX ** 2 + FY ** 2), 0.0, None))
    H = np.exp(1j * phase)
    u_c = np.asarray(u_re, np.float64) + 1j * np.asarray(u_im, np.float64)
    ref = np.fft.ifft2(np.fft.fft2(u_c) * H)

    # 1) f32 MXU operands: tight tolerance.
    bufs_f32 = make_asm_buffers(feature_size, wavelength, z, img_shape,
                                compute_dtype=jnp.float32)
    out_re, out_im = asm_propagate(u_re, u_im, bufs_f32)
    jax.block_until_ready(out_re)
    jax.block_until_ready(out_im)
    np.testing.assert_allclose(np.asarray(out_re), ref.real, atol=3e-3, rtol=3e-3)
    np.testing.assert_allclose(np.asarray(out_im), ref.imag, atol=3e-3, rtol=3e-3)

    # 2) default bf16 MXU operands (f32 accumulation; H multiply and the
    #    1/(Ny*Nx) normalization stay in f32).  Looser tolerance reflects only
    #    the bf16 operand rounding through four DFT stages.
    bufs_bf16 = make_asm_buffers(feature_size, wavelength, z, img_shape)
    out_re16, out_im16 = asm_propagate(u_re, u_im, bufs_bf16)
    jax.block_until_ready(out_re16)
    jax.block_until_ready(out_im16)
    np.testing.assert_allclose(np.asarray(out_re16), ref.real, atol=1e-1, rtol=1e-1)
    np.testing.assert_allclose(np.asarray(out_im16), ref.imag, atol=1e-1, rtol=1e-1)

    print("KERNEL_OK")
</pallas_src>

<mosaic_0001>
module attributes {stable_mosaic.version = 11 : i64} {
  func.func @_asm_kernel(%arg0: i32, %arg1: memref<1x256x128xf32, #tpu.memory_space<vmem>>, %arg2: memref<128x256xf32, #tpu.memory_space<vmem>>, %arg3: memref<256x128xf32, #tpu.memory_space<vmem>>, %arg4: memref<128x128xf32, #tpu.memory_space<vmem>>, %arg5: memref<128x128xf32, #tpu.memory_space<vmem>>, %arg6: memref<256x128xf32, #tpu.memory_space<vmem>>, %arg7: memref<128x256xf32, #tpu.memory_space<vmem>>, %arg8: memref<1x256x128xf32, #tpu.memory_space<vmem>>) attributes {dimension_semantics = [#tpu.dimension_semantics<parallel>], iteration_bounds = array<i64: 2>, scalar_prefetch = 0 : i64, scratch_operands = 0 : i64, tpu.core_type = #tpu.core_type<tc>, window_params = [{transform_indices = @transform_0, window_bounds = array<i64: 1, 256, 128>}, {pipeline_mode = #tpu.pipeline_mode<synchronous>, transform_indices = @transform_1, window_bounds = array<i64: 128, 256>}, {pipeline_mode = #tpu.pipeline_mode<synchronous>, transform_indices = @transform_2, window_bounds = array<i64: 256, 128>}, {pipeline_mode = #tpu.pipeline_mode<synchronous>, transform_indices = @transform_3, window_bounds = array<i64: 128, 128>}, {pipeline_mode = #tpu.pipeline_mode<synchronous>, transform_indices = @transform_4, window_bounds = array<i64: 128, 128>}, {pipeline_mode = #tpu.pipeline_mode<synchronous>, transform_indices = @transform_5, window_bounds = array<i64: 256, 128>}, {pipeline_mode = #tpu.pipeline_mode<synchronous>, transform_indices = @transform_6, window_bounds = array<i64: 128, 256>}, {transform_indices = @transform_7, window_bounds = array<i64: 1, 256, 128>}]} {
    %c0 = arith.constant 0 : index
    %c0_0 = arith.constant 0 : index
    %c0_1 = arith.constant 0 : index
    %0 = vector.load %arg1[%c0, %c0_0, %c0_1] : memref<1x256x128xf32, #tpu.memory_space<vmem>>, vector<1x256x128xf32>
    %1 = vector.shape_cast %0 : vector<1x256x128xf32> to vector<256x128xf32>
    %c0_2 = arith.constant 0 : index
    %c0_3 = arith.constant 0 : index
    %2 = vector.load %arg2[%c0_2, %c0_3] : memref<128x256xf32, #tpu.memory_space<vmem>>, vector<128x256xf32>
    %cst = arith.constant dense<0.000000e+00> : vector<256x256xf32>
    %3 = tpu.matmul %1, %2, %cst {dimension_numbers = #tpu.dot_dimension_numbers<[1], [0], [0], [1], [0, 0, 1, 1], [], []>} : vector<256x128xf32>, vector<128x256xf32>, vector<256x256xf32> -> vector<256x256xf32>
    %4 = vector.extract_strided_slice %3 {offsets = [0, 0], sizes = [128, 128], strides = [1, 1]} : vector<256x256xf32> to vector<128x128xf32>
    %5 = vector.extract_strided_slice %3 {offsets = [128, 128], sizes = [128, 128], strides = [1, 1]} : vector<256x256xf32> to vector<128x128xf32>
    %6 = arith.subf %4, %5 : vector<128x128xf32>
    %7 = vector.extract_strided_slice %3 {offsets = [0, 128], sizes = [128, 128], strides = [1, 1]} : vector<256x256xf32> to vector<128x128xf32>
    %8 = vector.extract_strided_slice %3 {offsets = [128, 0], sizes = [128, 128], strides = [1, 1]} : vector<256x256xf32> to vector<128x128xf32>
    %9 = arith.addf %7, %8 : vector<128x128xf32>
    %c0_4 = arith.constant 0 : index
    %c0_5 = arith.constant 0 : index
    %10 = vector.load %arg3[%c0_4, %c0_5] : memref<256x128xf32, #tpu.memory_space<vmem>>, vector<256x128xf32>
    %cst_6 = arith.constant dense<0.000000e+00> : vector<256x128xf32>
    %11 = tpu.matmul %10, %6, %cst_6 {dimension_numbers = #tpu.dot_dimension_numbers<[1], [0], [0], [1], [0, 0, 1, 1], [], []>} : vector<256x128xf32>, vector<128x128xf32>, vector<256x128xf32> -> vector<256x128xf32>
    %c0_7 = arith.constant 0 : index
    %c0_8 = arith.constant 0 : index
    %12 = vector.load %arg3[%c0_7, %c0_8] : memref<256x128xf32, #tpu.memory_space<vmem>>, vector<256x128xf32>
    %cst_9 = arith.constant dense<0.000000e+00> : vector<256x128xf32>
    %13 = tpu.matmul %12, %9, %cst_9 {dimension_numbers = #tpu.dot_dimension_numbers<[1], [0], [0], [1], [0, 0, 1, 1], [], []>} : vector<256x128xf32>, vector<128x128xf32>, vector<256x128xf32> -> vector<256x128xf32>
    %14 = vector.extract_strided_slice %11 {offsets = [0, 0], sizes = [128, 128], strides = [1, 1]} : vector<256x128xf32> to vector<128x128xf32>
    %15 = vector.extract_strided_slice %13 {offsets = [128, 0], sizes = [128, 128], strides = [1, 1]} : vector<256x128xf32> to vector<128x128xf32>
    %16 = arith.subf %14, %15 : vector<128x128xf32>
    %17 = vector.extract_strided_slice %13 {offsets = [0, 0], sizes = [128, 128], strides = [1, 1]} : vector<256x128xf32> to vector<128x128xf32>
    %18 = vector.extract_strided_slice %11 {offsets = [128, 0], sizes = [128, 128], strides = [1, 1]} : vector<256x128xf32> to vector<128x128xf32>
    %19 = arith.addf %17, %18 : vector<128x128xf32>
    %c0_10 = arith.constant 0 : index
    %c0_11 = arith.constant 0 : index
    %20 = vector.load %arg4[%c0_10, %c0_11] : memref<128x128xf32, #tpu.memory_space<vmem>>, vector<128x128xf32>
    %c0_12 = arith.constant 0 : index
    %c0_13 = arith.constant 0 : index
    %21 = vector.load %arg5[%c0_12, %c0_13] : memref<128x128xf32, #tpu.memory_space<vmem>>, vector<128x128xf32>
    %22 = arith.mulf %16, %20 : vector<128x128xf32>
    %23 = arith.mulf %19, %21 : vector<128x128xf32>
    %24 = arith.subf %22, %23 : vector<128x128xf32>
    %25 = arith.mulf %16, %21 : vector<128x128xf32>
    %26 = arith.mulf %19, %20 : vector<128x128xf32>
    %27 = arith.addf %25, %26 : vector<128x128xf32>
    %c0_14 = arith.constant 0 : index
    %c0_15 = arith.constant 0 : index
    %28 = vector.load %arg6[%c0_14, %c0_15] : memref<256x128xf32, #tpu.memory_space<vmem>>, vector<256x128xf32>
    %cst_16 = arith.constant dense<0.000000e+00> : vector<256x128xf32>
    %29 = tpu.matmul %28, %24, %cst_16 {dimension_numbers = #tpu.dot_dimension_numbers<[1], [0], [0], [1], [0, 0, 1, 1], [], []>} : vector<256x128xf32>, vector<128x128xf32>, vector<256x128xf32> -> vector<256x128xf32>
    %c0_17 = arith.constant 0 : index
    %c0_18 = arith.constant 0 : index
    %30 = vector.load %arg6[%c0_17, %c0_18] : memref<256x128xf32, #tpu.memory_space<vmem>>, vector<256x128xf32>
    %cst_19 = arith.constant dense<0.000000e+00> : vector<256x128xf32>
    %31 = tpu.matmul %30, %27, %cst_19 {dimension_numbers = #tpu.dot_dimension_numbers<[1], [0], [0], [1], [0, 0, 1, 1], [], []>} : vector<256x128xf32>, vector<128x128xf32>, vector<256x128xf32> -> vector<256x128xf32>
    %32 = vector.extract_strided_slice %29 {offsets = [0, 0], sizes = [128, 128], strides = [1, 1]} : vector<256x128xf32> to vector<128x128xf32>
    %33 = vector.extract_strided_slice %31 {offsets = [128, 0], sizes = [128, 128], strides = [1, 1]} : vector<256x128xf32> to vector<128x128xf32>
    %34 = arith.subf %32, %33 : vector<128x128xf32>
    %35 = vector.extract_strided_slice %31 {offsets = [0, 0], sizes = [128, 128], strides = [1, 1]} : vector<256x128xf32> to vector<128x128xf32>
    %36 = vector.extract_strided_slice %29 {offsets = [128, 0], sizes = [128, 128], strides = [1, 1]} : vector<256x128xf32> to vector<128x128xf32>
    %37 = arith.addf %35, %36 : vector<128x128xf32>
    %c0_20 = arith.constant 0 : index
    %c0_21 = arith.constant 0 : index
    %38 = vector.load %arg7[%c0_20, %c0_21] : memref<128x256xf32, #tpu.memory_space<vmem>>, vector<128x256xf32>
    %cst_22 = arith.constant dense<0.000000e+00> : vector<128x256xf32>
    %39 = tpu.matmul %34, %38, %cst_22 {dimension_numbers = #tpu.dot_dimension_numbers<[1], [0], [0], [1], [0, 0, 1, 1], [], []>} : vector<128x128xf32>, vector<128x256xf32>, vector<128x256xf32> -> vector<128x256xf32>
    %c0_23 = arith.constant 0 : index
    %c0_24 = arith.constant 0 : index
    %40 = vector.load %arg7[%c0_23, %c0_24] : memref<128x256xf32, #tpu.memory_space<vmem>>, vector<128x256xf32>
    %cst_25 = arith.constant dense<0.000000e+00> : vector<128x256xf32>
    %41 = tpu.matmul %37, %40, %cst_25 {dimension_numbers = #tpu.dot_dimension_numbers<[1], [0], [0], [1], [0, 0, 1, 1], [], []>} : vector<128x128xf32>, vector<128x256xf32>, vector<128x256xf32> -> vector<128x256xf32>
    %42 = vector.extract_strided_slice %39 {offsets = [0, 0], sizes = [128, 128], strides = [1, 1]} : vector<128x256xf32> to vector<128x128xf32>
    %43 = vector.extract_strided_slice %41 {offsets = [0, 128], sizes = [128, 128], strides = [1, 1]} : vector<128x256xf32> to vector<128x128xf32>
    %44 = arith.subf %42, %43 : vector<128x128xf32>
    %cst_26 = arith.constant 6.10351563E-5 : f32
    %45 = vector.broadcast %cst_26 : f32 to vector<128x128xf32>
    %46 = arith.mulf %44, %45 : vector<128x128xf32>
    %c0_27 = arith.constant 0 : index
    %c0_28 = arith.constant 0 : index
    %c0_29 = arith.constant 0 : index
    %47 = vector.load %arg8[%c0_27, %c0_28, %c0_29] : memref<1x256x128xf32, #tpu.memory_space<vmem>>, vector<1x128x128xf32>
    %48 = vector.shape_cast %47 : vector<1x128x128xf32> to vector<128x128xf32>
    %49 = vector.shape_cast %46 : vector<128x128xf32> to vector<1x128x128xf32>
    tpu.vector_store %arg8[%c0_27, %c0_28, %c0_29], %49 {strides = array<i32>} : memref<1x256x128xf32, #tpu.memory_space<vmem>>, vector<1x128x128xf32>,
    %50 = vector.extract_strided_slice %41 {offsets = [0, 0], sizes = [128, 128], strides = [1, 1]} : vector<128x256xf32> to vector<128x128xf32>
    %51 = vector.extract_strided_slice %39 {offsets = [0, 128], sizes = [128, 128], strides = [1, 1]} : vector<128x256xf32> to vector<128x128xf32>
    %52 = arith.addf %50, %51 : vector<128x128xf32>
    %cst_30 = arith.constant 6.10351563E-5 : f32
    %53 = vector.broadcast %cst_30 : f32 to vector<128x128xf32>
    %54 = arith.mulf %52, %53 : vector<128x128xf32>
    %c0_31 = arith.constant 0 : index
    %c128 = arith.constant 128 : index
    %c0_32 = arith.constant 0 : index
    %55 = vector.load %arg8[%c0_31, %c128, %c0_32] : memref<1x256x128xf32, #tpu.memory_space<vmem>>, vector<1x128x128xf32>
    %56 = vector.shape_cast %55 : vector<1x128x128xf32> to vector<128x128xf32>
    %57 = vector.shape_cast %54 : vector<128x128xf32> to vector<1x128x128xf32>
    tpu.vector_store %arg8[%c0_31, %c128, %c0_32], %57 {strides = array<i32>} : memref<1x256x128xf32, #tpu.memory_space<vmem>>, vector<1x128x128xf32>,
    return
  }
  func.func @transform_0(%arg0: i32) -> (i32, i32, i32) {
    %c0_i32 = arith.constant 0 : i32
    %c0_i32_0 = arith.constant 0 : i32
    %c0_i32_1 = arith.constant 0 : i32
    return %arg0, %c0_i32, %c0_i32_0 : i32, i32, i32
  }
  func.func @transform_1(%arg0: i32) -> (i32, i32) {
    %c0_i32 = arith.constant 0 : i32
    %c0_i32_0 = arith.constant 0 : i32
    %c0_i32_1 = arith.constant 0 : i32
    return %c0_i32, %c0_i32_0 : i32, i32
  }
  func.func @transform_2(%arg0: i32) -> (i32, i32) {
    %c0_i32 = arith.constant 0 : i32
    %c0_i32_0 = arith.constant 0 : i32
    %c0_i32_1 = arith.constant 0 : i32
    return %c0_i32, %c0_i32_0 : i32, i32
  }
  func.func @transform_3(%arg0: i32) -> (i32, i32) {
    %c0_i32 = arith.constant 0 : i32
    %c0_i32_0 = arith.constant 0 : i32
    %c0_i32_1 = arith.constant 0 : i32
    return %c0_i32, %c0_i32_0 : i32, i32
  }
  func.func @transform_4(%arg0: i32) -> (i32, i32) {
    %c0_i32 = arith.constant 0 : i32
    %c0_i32_0 = arith.constant 0 : i32
    %c0_i32_1 = arith.constant 0 : i32
    return %c0_i32, %c0_i32_0 : i32, i32
  }
  func.func @transform_5(%arg0: i32) -> (i32, i32) {
    %c0_i32 = arith.constant 0 : i32
    %c0_i32_0 = arith.constant 0 : i32
    %c0_i32_1 = arith.constant 0 : i32
    return %c0_i32, %c0_i32_0 : i32, i32
  }
  func.func @transform_6(%arg0: i32) -> (i32, i32) {
    %c0_i32 = arith.constant 0 : i32
    %c0_i32_0 = arith.constant 0 : i32
    %c0_i32_1 = arith.constant 0 : i32
    return %c0_i32, %c0_i32_0 : i32, i32
  }
  func.func @transform_7(%arg0: i32) -> (i32, i32, i32) {
    %c0_i32 = arith.constant 0 : i32
    %c0_i32_0 = arith.constant 0 : i32
    %c0_i32_1 = arith.constant 0 : i32
    return %arg0, %c0_i32, %c0_i32_0 : i32, i32, i32
  }
}

</mosaic_0001>

<llo_original>
// kernel: tpu_custom_call.1
$region0: #{tpu_custom_call.1}
  #allocation0 [shape = 'u32[]', space=smem, size = 0x4, offset = 0x4, fixed_abs, tag = 'smem constant byte address 0x4 - core index']
  #allocation1 [shape = 'u32[144,128]{1,0:T(1,128)}', space=vmem, size = 0x12000, scoped, tag = 'internal scratch']
  %s0 = inlined_call_operand.hbm [shape: f32[2,256,128], index: 0, kind: input, shape index: {}]
  %s1 = inlined_call_operand.hbm [shape: f32[128,256], index: 1, kind: input, shape index: {}]
  %s2 = inlined_call_operand.hbm [shape: f32[256,128], index: 2, kind: input, shape index: {}]
  %s3 = inlined_call_operand.hbm [shape: f32[128,128], index: 3, kind: input, shape index: {}]
  %s4 = inlined_call_operand.hbm [shape: f32[128,128], index: 4, kind: input, shape index: {}]
  %s5 = inlined_call_operand.hbm [shape: f32[256,128], index: 5, kind: input, shape index: {}]
  %s6 = inlined_call_operand.hbm [shape: f32[128,256], index: 6, kind: input, shape index: {}]
  %s7 = inlined_call_operand.hbm [shape: f32[2,256,128], index: 7, kind: output, shape index: {}]
  %s8 = sld [smem:[#allocation0]]
  $region89: #{tpu_custom_call.1} parent=0
    _
  %s10 = ssub.s32 1, %s8
  %s11 = scalar_select 0, %s10, %s8
  $region1: #{tpu_custom_call.1} parent=0
    #allocation2 [shape = 'u8[262144]{0}', space=vmem, size = 0x40000, scoped, tag = 'input window, operand 0']
    #allocation3 [shape = 's32[2]{0}', space=sflag, size = 0x8, scoped, tag = 'scoped memory for tpu_custom_call.1']
    #allocation4 [shape = 's32[2]{0}', space=sflag, size = 0x8, scoped, tag = 'scoped memory for tpu_custom_call.1']
    #allocation5 [shape = 'u8[131072]{0}', space=vmem, size = 0x20000, scoped, tag = 'input window, operand 1, single buffered']
    #allocation6 [shape = 's32[1]{0}', space=sflag, size = 0x4, scoped, tag = 'scoped memory for tpu_custom_call.1']
    #allocation7 [shape = 'u8[131072]{0}', space=vmem, size = 0x20000, scoped, tag = 'input window, operand 2, single buffered']
    #allocation8 [shape = 'u8[65536]{0}', space=vmem, size = 0x10000, scoped, tag = 'input window, operand 3, single buffered']
    #allocation9 [shape = 's32[1]{0}', space=sflag, size = 0x4, scoped, tag = 'scoped memory for tpu_custom_call.1']
    #allocation10 [shape = 'u8[65536]{0}', space=vmem, size = 0x10000, scoped, tag = 'input window, operand 4, single buffered']
    #allocation11 [shape = 'u8[131072]{0}', space=vmem, size = 0x20000, scoped, tag = 'input window, operand 5, single buffered']
    #allocation12 [shape = 's32[1]{0}', space=sflag, size = 0x4, scoped, tag = 'scoped memory for tpu_custom_call.1']
    #allocation13 [shape = 'u8[131072]{0}', space=vmem, size = 0x20000, scoped, tag = 'input window, operand 6, single buffered']
    #allocation14 [shape = 'u8[262144]{0}', space=vmem, size = 0x40000, scoped, tag = 'output window, operand 0']
    %12 = vsyncpa [#allocation3], 0
    %s13 = scalar_lea.sflag [#allocation3], 1
    %14 = vsyncpa %s13, 0
    %15 = vsyncpa [#allocation6], 0
    %16 = vsyncpa [#allocation9], 0
    %17 = vsyncpa [#allocation12], 0
    %18 = vsyncpa [#allocation4], 0
    %s19 = scalar_lea.sflag [#allocation4], 1
    %20 = vsyncpa %s19, 0
    loop: start=0, step=1, limit=4
    $region2: #{tpu_custom_call.1} parent=1 // loop_pre_header
      _
    $region3: #{tpu_custom_call.1} parent=1 // loop_header
      %s22 = sphi 0, %s26
      %p23 = scmp.ge.s32.totalorder %s22, 4
      %s32 = sphi 0, %s34
      %s35 = sphi 0, %s32
      %s36 = sphi 0, %s35
      %s52 = sphi 0, %s36
      %s56 = sphi 0, %s56
      %s58 = sphi 0, %s56
      %s59 = sphi 0, %s58
      %s73 = sphi 0, %s59
      %s77 = sphi 0, %s77
      %s79 = sphi 0, %s77
      %s80 = sphi 0, %s79
      %s94 = sphi 0, %s80
      %s98 = sphi 0, %s98
      %s100 = sphi 0, %s98
      %s101 = sphi 0, %s100
      %s115 = sphi 0, %s101
      %s119 = sphi 0, %s119
      %s121 = sphi 0, %s119
      %s122 = sphi 0, %s121
      %s136 = sphi 0, %s122
      %s140 = sphi 0, %s140
      %s142 = sphi 0, %s140
      %s143 = sphi 0, %s142
      %s157 = sphi 0, %s143
      %s161 = sphi 0, %s161
      %s163 = sphi 0, %s161
      %s164 = sphi 0, %s163
      %s178 = sphi 0, %s164
      %s184 = sphi 0, %s186
      %s187 = sphi 0, %s184
      %s188 = sphi 0, %s187
      %s204 = sphi 0, %s188
    $region4: #{tpu_custom_call.1} parent=1 // loop_header_branch
      %25 = sbr.rel (%p23) target = $region8
    $region5: #{tpu_custom_call.1} parent=1 // loop_body
      %s27 = ssub.s32 %s22, 1
      %s28 = ssub.s32 %s22, 2
      %s29 = sadd.s32 %s22, 1
      %s30 = ssub.s32 %s22, %s29
      %p31 = scmp.eq.s32.totalorder %s30, 0
      %s33 = sadd.s32 %s32, 1
      %s34 = scalar_select %p31, %s32, %s33
      %p37 = pneg %p31
      %p38 = scmp.eq.s32.totalorder %s22, 1
      %p39 = por %p37, %p38
      %p40 = scmp.ne.s32.totalorder %s32, %s35
      %p41 = scmp.eq.s32.totalorder %s22, 0
      %p42 = por %p40, %p41
      %p43 = scmp.ne.s32.totalorder %s32, %s35
      %p44 = scmp.eq.s32.totalorder %s27, 1
      %p45 = por %p43, %p44
      %p46 = scmp.ne.s32.totalorder %s35, %s36
      %p47 = scmp.eq.s32.totalorder %s27, 0
      %p48 = por %p46, %p47
      %p49 = scmp.ne.s32.totalorder %s35, %s36
      %p50 = scmp.eq.s32.totalorder %s28, 1
      %p51 = por %p49, %p50
      %p53 = scmp.ne.s32.totalorder %s36, %s52
      %p54 = scmp.eq.s32.totalorder %s28, 0
      %p55 = por %p53, %p54
      %s57 = sadd.s32 %s56, 1
      %p60 = scmp.eq.s32.totalorder %s22, 1
      %p61 = scmp.ne.s32.totalorder %s56, %s58
      %p62 = scmp.eq.s32.totalorder %s22, 0
      %p63 = por %p61, %p62
      %p64 = scmp.ne.s32.totalorder %s56, %s58
      %p65 = scmp.eq.s32.totalorder %s27, 1
      %p66 = por %p64, %p65
      %p67 = scmp.ne.s32.totalorder %s58, %s59
      %p68 = scmp.eq.s32.totalorder %s27, 0
      %p69 = por %p67, %p68
      %p70 = scmp.ne.s32.totalorder %s58, %s59
      %p71 = scmp.eq.s32.totalorder %s28, 1
      %p72 = por %p70, %p71
      %p74 = scmp.ne.s32.totalorder %s59, %s73
      %p75 = scmp.eq.s32.totalorder %s28, 0
      %p76 = por %p74, %p75
      %s78 = sadd.s32 %s77, 1
      %p81 = scmp.eq.s32.totalorder %s22, 1
      %p82 = scmp.ne.s32.totalorder %s77, %s79
      %p83 = scmp.eq.s32.totalorder %s22, 0
      %p84 = por %p82, %p83
      %p85 = scmp.ne.s32.totalorder %s77, %s79
      %p86 = scmp.eq.s32.totalorder %s27, 1
      %p87 = por %p85, %p86
      %p88 = scmp.ne.s32.totalorder %s79, %s80
      %p89 = scmp.eq.s32.totalorder %s27, 0
      %p90 = por %p88, %p89
      %p91 = scmp.ne.s32.totalorder %s79, %s80
      %p92 = scmp.eq.s32.totalorder %s28, 1
      %p93 = por %p91, %p92
      %p95 = scmp.ne.s32.totalorder %s80, %s94
      %p96 = scmp.eq.s32.totalorder %s28, 0
      %p97 = por %p95, %p96
      %s99 = sadd.s32 %s98, 1
      %p102 = scmp.eq.s32.totalorder %s22, 1
      %p103 = scmp.ne.s32.totalorder %s98, %s100
      %p104 = scmp.eq.s32.totalorder %s22, 0
      %p105 = por %p103, %p104
      %p106 = scmp.ne.s32.totalorder %s98, %s100
      %p107 = scmp.eq.s32.totalorder %s27, 1
      %p108 = por %p106, %p107
      %p109 = scmp.ne.s32.totalorder %s100, %s101
      %p110 = scmp.eq.s32.totalorder %s27, 0
      %p111 = por %p109, %p110
      %p112 = scmp.ne.s32.totalorder %s100, %s101
      %p113 = scmp.eq.s32.totalorder %s28, 1
      %p114 = por %p112, %p113
      %p116 = scmp.ne.s32.totalorder %s101, %s115
      %p117 = scmp.eq.s32.totalorder %s28, 0
      %p118 = por %p116, %p117
      %s120 = sadd.s32 %s119, 1
      %p123 = scmp.eq.s32.totalorder %s22, 1
      %p124 = scmp.ne.s32.totalorder %s119, %s121
      %p125 = scmp.eq.s32.totalorder %s22, 0
      %p126 = por %p124, %p125
      %p127 = scmp.ne.s32.totalorder %s119, %s121
      %p128 = scmp.eq.s32.totalorder %s27, 1
      %p129 = por %p127, %p128
      %p130 = scmp.ne.s32.totalorder %s121, %s122
      %p131 = scmp.eq.s32.totalorder %s27, 0
      %p132 = por %p130, %p131
      %p133 = scmp.ne.s32.totalorder %s121, %s122
      %p134 = scmp.eq.s32.totalorder %s28, 1
      %p135 = por %p133, %p134
      %p137 = scmp.ne.s32.totalorder %s122, %s136
      %p138 = scmp.eq.s32.totalorder %s28, 0
      %p139 = por %p137, %p138
      %s141 = sadd.s32 %s140, 1
      %p144 = scmp.eq.s32.totalorder %s22, 1
      %p145 = scmp.ne.s32.totalorder %s140, %s142
      %p146 = scmp.eq.s32.totalorder %s22, 0
      %p147 = por %p145, %p146
      %p148 = scmp.ne.s32.totalorder %s140, %s142
      %p149 = scmp.eq.s32.totalorder %s27, 1
      %p150 = por %p148, %p149
      %p151 = scmp.ne.s32.totalorder %s142, %s143
      %p152 = scmp.eq.s32.totalorder %s27, 0
      %p153 = por %p151, %p152
      %p154 = scmp.ne.s32.totalorder %s142, %s143
      %p155 = scmp.eq.s32.totalorder %s28, 1
      %p156 = por %p154, %p155
      %p158 = scmp.ne.s32.totalorder %s143, %s157
      %p159 = scmp.eq.s32.totalorder %s28, 0
      %p160 = por %p158, %p159
      %s162 = sadd.s32 %s161, 1
      %p165 = scmp.eq.s32.totalorder %s22, 1
      %p166 = scmp.ne.s32.totalorder %s161, %s163
      %p167 = scmp.eq.s32.totalorder %s22, 0
      %p168 = por %p166, %p167
      %p169 = scmp.ne.s32.totalorder %s161, %s163
      %p170 = scmp.eq.s32.totalorder %s27, 1
      %p171 = por %p169, %p170
      %p172 = scmp.ne.s32.totalorder %s163, %s164
      %p173 = scmp.eq.s32.totalorder %s27, 0
      %p174 = por %p172, %p173
      %p175 = scmp.ne.s32.totalorder %s163, %s164
      %p176 = scmp.eq.s32.totalorder %s28, 1
      %p177 = por %p175, %p176
      %p179 = scmp.ne.s32.totalorder %s164, %s178
      %p180 = scmp.eq.s32.totalorder %s28, 0
      %p181 = por %p179, %p180
      %s182 = ssub.s32 %s22, %s29
      %p183 = scmp.eq.s32.totalorder %s182, 0
      %s185 = sadd.s32 %s184, 1
      %s186 = scalar_select %p183, %s184, %s185
      %p189 = pneg %p183
      %p190 = scmp.eq.s32.totalorder %s22, 1
      %p191 = por %p189, %p190
      %p192 = scmp.ne.s32.totalorder %s184, %s187
      %p193 = scmp.eq.s32.totalorder %s22, 0
      %p194 = por %p192, %p193
      %p195 = scmp.ne.s32.totalorder %s184, %s187
      %p196 = scmp.eq.s32.totalorder %s27, 1
      %p197 = por %p195, %p196
      %p198 = scmp.ne.s32.totalorder %s187, %s188
      %p199 = scmp.eq.s32.totalorder %s27, 0
      %p200 = por %p198, %p199
      %p201 = scmp.ne.s32.totalorder %s187, %s188
      %p202 = scmp.eq.s32.totalorder %s28, 1
      %p203 = por %p201, %p202
      %p205 = scmp.ne.s32.totalorder %s188, %s204
      %p206 = scmp.eq.s32.totalorder %s28, 0
      %p207 = por %p205, %p206
      %p208 = scmp.le.s32.totalorder 1, %s22
      %p209 = scmp.lt.s32.totalorder %s22, 3
      %p210 = pnand %p208, %p209
      %p211 = pneg %p210
      // Predicated region
      $region9: #{tpu_custom_call.1} parent=5 // pred_check
        _
      $region10: #{tpu_custom_call.1} parent=5 // pred_check_branch
        %213 = sbr.rel (%p210) target = $region12
      $region11: #{tpu_custom_call.1} parent=5 // pred_region
        %s214 = ssub.s32 %s22, 1
        // Predicated region
        $region13: #{tpu_custom_call.1} parent=11 // pred_check
          %p215 = pneg %p69
        $region14: #{tpu_custom_call.1} parent=11 // pred_check_branch
          %217 = sbr.rel (%p215) target = $region16
        $region15: #{tpu_custom_call.1} parent=11 // pred_region
          %s219 = ssub.s32 4096, 4096
          %220 = vsyncadd [#allocation6], %s219
          %s221 = sshll.u32 [#allocation5], 4
          %s222 = int_to_ptr.vmem [resolvable:$true] %s221
          %227 = dma.hbm_to_vmem [thread:$0]  %s1, 4096, %s222, [#allocation6], 256, 256, 16
        $region16: #{tpu_custom_call.1} parent=11 // pred_fallthru
          _
        // Predicated region
        $region17: #{tpu_custom_call.1} parent=11 // pred_check
          %p228 = pneg %p90
        $region18: #{tpu_custom_call.1} parent=11 // pred_check_branch
          %230 = sbr.rel (%p228) target = $region20
        $region19: #{tpu_custom_call.1} parent=11 // pred_region
          %s232 = ssub.s32 4096, 4096
          %233 = vsyncadd [#allocation6], %s232
          %s234 = sshll.u32 [#allocation7], 4
          %s235 = int_to_ptr.vmem [resolvable:$true] %s234
          %240 = dma.hbm_to_vmem [thread:$0]  %s2, 4096, %s235, [#allocation6], 128, 128, 8
        $region20: #{tpu_custom_call.1} parent=11 // pred_fallthru
          _
        // Predicated region
        $region21: #{tpu_custom_call.1} parent=11 // pred_check
          %p241 = pneg %p111
        $region22: #{tpu_custom_call.1} parent=11 // pred_check_branch
          %243 = sbr.rel (%p241) target = $region24
        $region23: #{tpu_custom_call.1} parent=11 // pred_region
          %s245 = ssub.s32 2048, 2048
          %246 = vsyncadd [#allocation9], %s245
          %s247 = sshll.u32 [#allocation8], 4
          %s248 = int_to_ptr.vmem [resolvable:$true] %s247
          %253 = dma.hbm_to_vmem [thread:$0]  %s3, 2048, %s248, [#allocation9], 128, 128, 8
        $region24: #{tpu_custom_call.1} parent=11 // pred_fallthru
          _
        // Predicated region
        $region25: #{tpu_custom_call.1} parent=11 // pred_check
          %p254 = pneg %p132
        $region26: #{tpu_custom_call.1} parent=11 // pred_check_branch
          %256 = sbr.rel (%p254) target = $region28
        $region27: #{tpu_custom_call.1} parent=11 // pred_region
          %s258 = ssub.s32 2048, 2048
          %259 = vsyncadd [#allocation9], %s258
          %s260 = sshll.u32 [#allocation10], 4
          %s261 = int_to_ptr.vmem [resolvable:$true] %s260
          %266 = dma.hbm_to_vmem [thread:$0]  %s4, 2048, %s261, [#allocation9], 128, 128, 8
        $region28: #{tpu_custom_call.1} parent=11 // pred_fallthru
          _
        // Predicated region
        $region29: #{tpu_custom_call.1} parent=11 // pred_check
          %p267 = pneg %p153
        $region30: #{tpu_custom_call.1} parent=11 // pred_check_branch
          %269 = sbr.rel (%p267) target = $region32
        $region31: #{tpu_custom_call.1} parent=11 // pred_region
          %s271 = ssub.s32 4096, 4096
          %272 = vsyncadd [#allocation12], %s271
          %s273 = sshll.u32 [#allocation11], 4
          %s274 = int_to_ptr.vmem [resolvable:$true] %s273
          %279 = dma.hbm_to_vmem [thread:$0]  %s5, 4096, %s274, [#allocation12], 128, 128, 8
        $region32: #{tpu_custom_call.1} parent=11 // pred_fallthru
          _
        // Predicated region
        $region33: #{tpu_custom_call.1} parent=11 // pred_check
          %p280 = pneg %p174
        $region34: #{tpu_custom_call.1} parent=11 // pred_check_branch
          %282 = sbr.rel (%p280) target = $region36
        $region35: #{tpu_custom_call.1} parent=11 // pred_region
          %s284 = ssub.s32 4096, 4096
          %285 = vsyncadd [#allocation12], %s284
          %s286 = sshll.u32 [#allocation13], 4
          %s287 = int_to_ptr.vmem [resolvable:$true] %s286
          %292 = dma.hbm_to_vmem [thread:$0]  %s6, 4096, %s287, [#allocation12], 256, 256, 16
        $region36: #{tpu_custom_call.1} parent=11 // pred_fallthru
          _
      $region12: #{tpu_custom_call.1} parent=5 // pred_fallthru
        _
      %p293 = scmp.lt.s32.totalorder %s22, 2
      // Predicated region
      $region37: #{tpu_custom_call.1} parent=5 // pred_check
        %p294 = pneg %p293
      $region38: #{tpu_custom_call.1} parent=5 // pred_check_branch
        %296 = sbr.rel (%p294) target = $region40
      $region39: #{tpu_custom_call.1} parent=5 // pred_region
        // Predicated region
        $region41: #{tpu_custom_call.1} parent=39 // pred_check
          %p297 = pneg %p42
        $region42: #{tpu_custom_call.1} parent=39 // pred_check_branch
          %299 = sbr.rel (%p297) target = $region44
        $region43: #{tpu_custom_call.1} parent=39 // pred_region
          %s300 = sand.u32 %s32, 1
          %s301 = scalar_lea.sflag [#allocation3], %s300
          %s302 = sand.u32 %s32, 1
          %s303 = smul.addr %s302, 256
          %s304 = scalar_lea.vmem [#allocation2], %s303
          %s306 = ssub.s32 4096, 4096
          %307 = vsyncadd %s301, %s306
          %s308 = smul.addr %s22, 32
          %s309 = smul.addr %s308, 128
          %s310 = scalar_lea.hbm %s0, %s309
          %s311 = sshll.u32 %s304, 4
          %s312 = int_to_ptr.vmem [resolvable:$true] %s311
          %317 = dma.hbm_to_vmem [thread:$0]  %s310, 4096, %s312, %s301, 128, 128, 8
        $region44: #{tpu_custom_call.1} parent=39 // pred_fallthru
          _
      $region40: #{tpu_custom_call.1} parent=5 // pred_fallthru
        _
      %p318 = scmp.le.s32.totalorder 1, %s22
      %p319 = scmp.lt.s32.totalorder %s22, 3
      %p320 = pnand %p318, %p319
      %p321 = pneg %p320
      // Predicated region
      $region45: #{tpu_custom_call.1} parent=5 // pred_check
        _
      $region46: #{tpu_custom_call.1} parent=5 // pred_check_branch
        %323 = sbr.rel (%p320) target = $region48
      $region47: #{tpu_custom_call.1} parent=5 // pred_region
        %s324 = ssub.s32 %s22, 1
        %s325 = sand.u32 %s35, 1
        %s326 = scalar_lea.sflag [#allocation3], %s325
        %s327 = sand.u32 %s35, 1
        %s328 = smul.addr %s327, 256
        %s329 = scalar_lea.vmem [#allocation2], %s328
        // Predicated region
        $region49: #{tpu_custom_call.1} parent=47 // pred_check
          %p330 = pneg %p48
        $region50: #{tpu_custom_call.1} parent=47 // pred_check_branch
          %332 = sbr.rel (%p330) target = $region52
        $region51: #{tpu_custom_call.1} parent=47 // pred_region
          %333 = dma.done %s326, 4096
        $region52: #{tpu_custom_call.1} parent=47 // pred_fallthru
          _
        // Predicated region
        $region53: #{tpu_custom_call.1} parent=47 // pred_check
          %p334 = pneg %p69
        $region54: #{tpu_custom_call.1} parent=47 // pred_check_branch
          %336 = sbr.rel (%p334) target = $region56
        $region55: #{tpu_custom_call.1} parent=47 // pred_region
          %337 = dma.done [#allocation6], 4096
        $region56: #{tpu_custom_call.1} parent=47 // pred_fallthru
          _
        // Predicated region
        $region57: #{tpu_custom_call.1} parent=47 // pred_check
          %p338 = pneg %p90
        $region58: #{tpu_custom_call.1} parent=47 // pred_check_branch
          %340 = sbr.rel (%p338) target = $region60
        $region59: #{tpu_custom_call.1} parent=47 // pred_region
          %341 = dma.done [#allocation6], 4096
        $region60: #{tpu_custom_call.1} parent=47 // pred_fallthru
          _
        // Predicated region
        $region61: #{tpu_custom_call.1} parent=47 // pred_check
          %p342 = pneg %p111
        $region62: #{tpu_custom_call.1} parent=47 // pred_check_branch
          %344 = sbr.rel (%p342) target = $region64
        $region63: #{tpu_custom_call.1} parent=47 // pred_region
          %345 = dma.done [#allocation9], 2048
        $region64: #{tpu_custom_call.1} parent=47 // pred_fallthru
          _
        // Predicated region
        $region65: #{tpu_custom_call.1} parent=47 // pred_check
          %p346 = pneg %p132
        $region66: #{tpu_custom_call.1} parent=47 // pred_check_branch
          %348 = sbr.rel (%p346) target = $region68
        $region67: #{tpu_custom_call.1} parent=47 // pred_region
          %349 = dma.done [#allocation9], 2048
        $region68: #{tpu_custom_call.1} parent=47 // pred_fallthru
          _
        // Predicated region
        $region69: #{tpu_custom_call.1} parent=47 // pred_check
          %p350 = pneg %p153
        $region70: #{tpu_custom_call.1} parent=47 // pred_check_branch
          %352 = sbr.rel (%p350) target = $region72
        $region71: #{tpu_custom_call.1} parent=47 // pred_region
          %353 = dma.done [#allocation12], 4096
        $region72: #{tpu_custom_call.1} parent=47 // pred_fallthru
          _
        // Predicated region
        $region73: #{tpu_custom_call.1} parent=47 // pred_check
          %p354 = pneg %p174
        $region74: #{tpu_custom_call.1} parent=47 // pred_check_branch
          %356 = sbr.rel (%p354) target = $region76
        $region75: #{tpu_custom_call.1} parent=47 // pred_region
          %357 = dma.done [#allocation12], 4096
        $region76: #{tpu_custom_call.1} parent=47 // pred_fallthru
          _
        %s358 = sand.u32 %s35, 1
        %s359 = scalar_lea.sflag [#allocation3], %s358
        %s360 = sand.u32 %s35, 1
        %s361 = smul.addr %s360, 256
        %s362 = scalar_lea.vmem [#allocation2], %s361
        %p363 = pneg %p48
        %p364 = pneg %p45
        %p365 = pneg %p69
        %p366 = pneg %p66
        %p367 = pneg %p90
        %p368 = pneg %p87
        %p369 = pneg %p111
        %p370 = pneg %p108
        %p371 = pneg %p132
        %p372 = pneg %p129
        %p373 = pneg %p153
        %p374 = pneg %p150
        %p375 = pneg %p174
        %p376 = pneg %p171
        %p377 = pneg %p200
        %p378 = pneg %p197
        %s379 = sand.u32 %s187, 1
        %s380 = scalar_lea.sflag [#allocation4], %s379
        %s381 = sand.u32 %s187, 1
        %s382 = smul.addr %s381, 256
        %s383 = scalar_lea.vmem [#allocation14], %s382
        %v384 = vld [vmem:[%s329] sm:$0xff]
        %v385 = vld [vmem:[%s329 + $0x8] sm:$0xff]
        %v386 = vld [vmem:[%s329 + $0x10] sm:$0xff]
        %v387 = vld [vmem:[%s329 + $0x18] sm:$0xff]
        %v388 = vld [vmem:[%s329 + $0x20] sm:$0xff]
        %v389 = vld [vmem:[%s329 + $0x28] sm:$0xff]
        %v390 = vld [vmem:[%s329 + $0x30] sm:$0xff]
        %v391 = vld [vmem:[%s329 + $0x38] sm:$0xff]
        %v392 = vld [vmem:[%s329 + $0x40] sm:$0xff]
        %v393 = vld [vmem:[%s329 + $0x48] sm:$0xff]
        %v394 = vld [vmem:[%s329 + $0x50] sm:$0xff]
        %v395 = vld [vmem:[%s329 + $0x58] sm:$0xff]
        %v396 = vld [vmem:[%s329 + $0x60] sm:$0xff]
        %v397 = vld [vmem:[%s329 + $0x68] sm:$0xff]
        %v398 = vld [vmem:[%s329 + $0x70] sm:$0xff]
        %v399 = vld [vmem:[%s329 + $0x78] sm:$0xff]
        %v400 = vld [vmem:[%s329 + $0x80] sm:$0xff]
        %v401 = vld [vmem:[%s329 + $0x88] sm:$0xff]
        %v402 = vld [vmem:[%s329 + $0x90] sm:$0xff]
        %v403 = vld [vmem:[%s329 + $0x98] sm:$0xff]
        %v404 = vld [vmem:[%s329 + $0xa0] sm:$0xff]
        %v405 = vld [vmem:[%s329 + $0xa8] sm:$0xff]
        %v406 = vld [vmem:[%s329 + $0xb0] sm:$0xff]
        %v407 = vld [vmem:[%s329 + $0xb8] sm:$0xff]
        %v408 = vld [vmem:[%s329 + $0xc0] sm:$0xff]
        %v409 = vld [vmem:[%s329 + $0xc8] sm:$0xff]
        %v410 = vld [vmem:[%s329 + $0xd0] sm:$0xff]
        %v411 = vld [vmem:[%s329 + $0xd8] sm:$0xff]
        %v412 = vld [vmem:[%s329 + $0xe0] sm:$0xff]
        %v413 = vld [vmem:[%s329 + $0xe8] sm:$0xff]
        %v414 = vld [vmem:[%s329 + $0xf0] sm:$0xff]
        %v415 = vld [vmem:[%s329 + $0xf8] sm:$0xff]
        %v416 = vld [vmem:[#allocation5] sm:$0xff]
        %v417 = vld [vmem:[#allocation5 + $0x8] sm:$0xff]
        %v418 = vld [vmem:[#allocation5 + $0x10] sm:$0xff]
        %v419 = vld [vmem:[#allocation5 + $0x18] sm:$0xff]
        %v420 = vld [vmem:[#allocation5 + $0x20] sm:$0xff]
        %v421 = vld [vmem:[#allocation5 + $0x28] sm:$0xff]
        %v422 = vld [vmem:[#allocation5 + $0x30] sm:$0xff]
        %v423 = vld [vmem:[#allocation5 + $0x38] sm:$0xff]
        %v424 = vld [vmem:[#allocation5 + $0x40] sm:$0xff]
        %v425 = vld [vmem:[#allocation5 + $0x48] sm:$0xff]
        %v426 = vld [vmem:[#allocation5 + $0x50] sm:$0xff]
        %v427 = vld [vmem:[#allocation5 + $0x58] sm:$0xff]
        %v428 = vld [vmem:[#allocation5 + $0x60] sm:$0xff]
        %v429 = vld [vmem:[#allocation5 + $0x68] sm:$0xff]
        %v430 = vld [vmem:[#allocation5 + $0x70] sm:$0xff]
        %v431 = vld [vmem:[#allocation5 + $0x78] sm:$0xff]
        %v432 = vld [vmem:[#allocation5 + $0x80] sm:$0xff]
        %v433 = vld [vmem:[#allocation5 + $0x88] sm:$0xff]
        %v434 = vld [vmem:[#allocation5 + $0x90] sm:$0xff]
        %v435 = vld [vmem:[#allocation5 + $0x98] sm:$0xff]
        %v436 = vld [vmem:[#allocation5 + $0xa0] sm:$0xff]
        %v437 = vld [vmem:[#allocation5 + $0xa8] sm:$0xff]
        %v438 = vld [vmem:[#allocation5 + $0xb0] sm:$0xff]
        %v439 = vld [vmem:[#allocation5 + $0xb8] sm:$0xff]
        %v440 = vld [vmem:[#allocation5 + $0xc0] sm:$0xff]
        %v441 = vld [vmem:[#allocation5 + $0xc8] sm:$0xff]
        %v442 = vld [vmem:[#allocation5 + $0xd0] sm:$0xff]
        %v443 = vld [vmem:[#allocation5 + $0xd8] sm:$0xff]
        %v444 = vld [vmem:[#allocation5 + $0xe0] sm:$0xff]
        %v445 = vld [vmem:[#allocation5 + $0xe8] sm:$0xff]
        %v446 = vld [vmem:[#allocation5 + $0xf0] sm:$0xff]
        %v447 = vld [vmem:[#allocation5 + $0xf8] sm:$0xff]
        %448 = vmatprep.subr.mxu0 %v417
        %449 = vmatpush1.msra.mxu0 %v416
        %450 = vmatprep.subr.mxu0 %v419
        %451 = vmatpush1.msra.mxu0 %v418
        %452 = vmatprep.subr.mxu0 %v421
        %453 = vmatpush1.msra.mxu0 %v420
        %454 = vmatprep.subr.mxu0 %v423
        %455 = vmatpush1.msra.mxu0 %v422
        %456 = vmatprep.subr.mxu0 %v425
        %457 = vmatpush1.msra.mxu0 %v424
        %458 = vmatprep.subr.mxu0 %v427
        %459 = vmatpush1.msra.mxu0 %v426
        %460 = vmatprep.subr.mxu0 %v429
        %461 = vmatpush1.msra.mxu0 %v428
        %462 = vmatprep.subr.mxu0 %v431
        %463 = vmatpush1.msra.mxu0 %v430
        %464 = vmatprep.subr.mxu0 %v433
        %465 = vmatpush1.msra.mxu0 %v432
        %466 = vmatprep.subr.mxu0 %v435
        %467 = vmatpush1.msra.mxu0 %v434
        %468 = vmatprep.subr.mxu0 %v437
        %469 = vmatpush1.msra.mxu0 %v436
        %470 = vmatprep.subr.mxu0 %v439
        %471 = vmatpush1.msra.mxu0 %v438
        %472 = vmatprep.subr.mxu0 %v441
        %473 = vmatpush1.msra.mxu0 %v440
        %474 = vmatprep.subr.mxu0 %v443
        %475 = vmatpush1.msra.mxu0 %v442
        %476 = vmatprep.subr.mxu0 %v445
        %477 = vmatpush1.msra.mxu0 %v444
        %478 = vmatprep.subr.mxu0 %v447
        %479 = vmatpush1.msra.mxu0 %v446
        %480 = vmatprep.subr.mxu0 0.0
        %481 = vmatpush1.msra.mxu0 0.0
        %482 = vmatprep.subr.mxu0 0.0
        %483 = vmatpush1.msra.mxu0 0.0
        %484 = vmatprep.subr.mxu0 0.0
        %485 = vmatpush1.msra.mxu0 0.0
        %486 = vmatprep.subr.mxu0 0.0
        %487 = vmatpush1.msra.mxu0 0.0
        %488 = vmatprep.subr.mxu0 0.0
        %489 = vmatpush1.msra.mxu0 0.0
        %490 = vmatprep.subr.mxu0 0.0
        %491 = vmatpush1.msra.mxu0 0.0
        %492 = vmatprep.subr.mxu0 0.0
        %493 = vmatpush1.msra.mxu0 0.0
        %494 = vmatprep.subr.mxu0 0.0
        %495 = vmatpush1.msra.mxu0 0.0
        %496 = vmatprep.subr.mxu0 0.0
        %497 = vmatpush1.msra.mxu0 0.0
        %498 = vmatprep.subr.mxu0 0.0
        %499 = vmatpush1.msra.mxu0 0.0
        %500 = vmatprep.subr.mxu0 0.0
        %501 = vmatpush1.msra.mxu0 0.0
        %502 = vmatprep.subr.mxu0 0.0
        %503 = vmatpush1.msra.mxu0 0.0
        %504 = vmatprep.subr.mxu0 0.0
        %505 = vmatpush1.msra.mxu0 0.0
        %506 = vmatprep.subr.mxu0 0.0
        %507 = vmatpush1.msra.mxu0 0.0
        %508 = vmatprep.subr.mxu0 0.0
        %509 = vmatpush1.msra.mxu0 0.0
        %510 = vmatprep.subr.mxu0 0.0
        %511 = vmatpush1.msra.mxu0 0.0
        %512 = vmatprep.mubr.f32.mxu0 0.0
        %513 = vmatmul.mubr.f32.gmra.mrb[0].mxu0 %v384
        %v514 = vpop.f32.mrb[0].mxu0
        %v515 = vadd.f32 0.0, %v514
        %v516 = vpop.f32.mrb[0].mxu0
        %v517 = vadd.f32 0.0, %v516
        %518 = vmatprep.mubr.f32.mxu0 0.0
        %519 = vmatmul.mubr.f32.gmra.mrb[0].mxu0 %v385
        %v520 = vpop.f32.mrb[0].mxu0
        %v521 = vadd.f32 0.0, %v520
        %v522 = vpop.f32.mrb[0].mxu0
        %v523 = vadd.f32 0.0, %v522
        %524 = vmatprep.mubr.f32.mxu0 0.0
        %525 = vmatmul.mubr.f32.gmra.mrb[0].mxu0 %v386
        %v526 = vpop.f32.mrb[0].mxu0
        %v527 = vadd.f32 0.0, %v526
        %v528 = vpop.f32.mrb[0].mxu0
        %v529 = vadd.f32 0.0, %v528
        %530 = vmatprep.mubr.f32.mxu0 0.0
        %531 = vmatmul.mubr.f32.gmra.mrb[0].mxu0 %v387
        %v532 = vpop.f32.mrb[0].mxu0
        %v533 = vadd.f32 0.0, %v532
        %v534 = vpop.f32.mrb[0].mxu0
        %v535 = vadd.f32 0.0, %v534
        %536 = vmatprep.mubr.f32.mxu0 0.0
        %537 = vmatmul.mubr.f32.gmra.mrb[0].mxu0 %v388
        %v538 = vpop.f32.mrb[0].mxu0
        %v539 = vadd.f32 0.0, %v538
        %v540 = vpop.f32.mrb[0].mxu0
        %v541 = vadd.f32 0.0, %v540
        %542 = vmatprep.mubr.f32.mxu0 0.0
        %543 = vmatmul.mubr.f32.gmra.mrb[0].mxu0 %v389
        %v544 = vpop.f32.mrb[0].mxu0
        %v545 = vadd.f32 0.0, %v544
        %v546 = vpop.f32.mrb[0].mxu0
        %v547 = vadd.f32 0.0, %v546
        %548 = vmatprep.mubr.f32.mxu0 0.0
        %549 = vmatmul.mubr.f32.gmra.mrb[0].mxu0 %v390
        %v550 = vpop.f32.mrb[0].mxu0
        %v551 = vadd.f32 0.0, %v550
        %v552 = vpop.f32.mrb[0].mxu0
        %v553 = vadd.f32 0.0, %v552
        %554 = vmatprep.mubr.f32.mxu0 0.0
        %555 = vmatmul.mubr.f32.gmra.mrb[0].mxu0 %v391
        %v556 = vpop.f32.mrb[0].mxu0
        %v557 = vadd.f32 0.0, %v556
        %v558 = vpop.f32.mrb[0].mxu0
        %v559 = vadd.f32 0.0, %v558
        %560 = vmatprep.mubr.f32.mxu0 0.0
        %561 = vmatmul.mubr.f32.gmra.mrb[0].mxu0 %v392
        %v562 = vpop.f32.mrb[0].mxu0
        %v563 = vadd.f32 0.0, %v562
        %v564 = vpop.f32.mrb[0].mxu0
        %v565 = vadd.f32 0.0, %v564
        %566 = vmatprep.mubr.f32.mxu0 0.0
        %567 = vmatmul.mubr.f32.gmra.mrb[0].mxu0 %v393
        %v568 = vpop.f32.mrb[0].mxu0
        %v569 = vadd.f32 0.0, %v568
        %v570 = vpop.f32.mrb[0].mxu0
        %v571 = vadd.f32 0.0, %v570
        %572 = vmatprep.mubr.f32.mxu0 0.0
        %573 = vmatmul.mubr.f32.gmra.mrb[0].mxu0 %v394
        %v574 = vpop.f32.mrb[0].mxu0
        %v575 = vadd.f32 0.0, %v574
        %v576 = vpop.f32.mrb[0].mxu0
        %v577 = vadd.f32 0.0, %v576
        %578 = vmatprep.mubr.f32.mxu0 0.0
        %579 = vmatmul.mubr.f32.gmra.mrb[0].mxu0 %v395
        %v580 = vpop.f32.mrb[0].mxu0
        %v581 = vadd.f32 0.0, %v580
        %v582 = vpop.f32.mrb[0].mxu0
        %v583 = vadd.f32 0.0, %v582
        %584 = vmatprep.mubr.f32.mxu0 0.0
        %585 = vmatmul.mubr.f32.gmra.mrb[0].mxu0 %v396
        %v586 = vpop.f32.mrb[0].mxu0
        %v587 = vadd.f32 0.0, %v586
        %v588 = vpop.f32.mrb[0].mxu0
        %v589 = vadd.f32 0.0, %v588
        %590 = vmatprep.mubr.f32.mxu0 0.0
        %591 = vmatmul.mubr.f32.gmra.mrb[0].mxu0 %v397
        %v592 = vpop.f32.mrb[0].mxu0
        %v593 = vadd.f32 0.0, %v592
        %v594 = vpop.f32.mrb[0].mxu0
        %v595 = vadd.f32 0.0, %v594
        %596 = vmatprep.mubr.f32.mxu0 0.0
        %597 = vmatmul.mubr.f32.gmra.mrb[0].mxu0 %v398
        %v598 = vpop.f32.mrb[0].mxu0
        %v599 = vadd.f32 0.0, %v598
        %v600 = vpop.f32.mrb[0].mxu0
        %v601 = vadd.f32 0.0, %v600
        %602 = vmatprep.mubr.f32.mxu0 0.0
        %603 = vmatmul.mubr.f32.gmra.mrb[0].mxu0 %v399
        %v604 = vpop.f32.mrb[0].mxu0
        %v605 = vadd.f32 0.0, %v604
        %v606 = vpop.f32.mrb[0].mxu0
        %v607 = vadd.f32 0.0, %v606
        %608 = vmatprep.mubr.f32.mxu0 0.0
        %609 = vmatmul.mubr.f32.gmra.mrb[0].mxu0 %v400
        %v610 = vpop.f32.mrb[0].mxu0
        %v611 = vadd.f32 0.0, %v610
        %v612 = vpop.f32.mrb[0].mxu0
        %v613 = vadd.f32 0.0, %v612
        %614 = vmatprep.mubr.f32.mxu0 0.0
        %615 = vmatmul.mubr.f32.gmra.mrb[0].mxu0 %v401
        %v616 = vpop.f32.mrb[0].mxu0
        %v617 = vadd.f32 0.0, %v616
        %v618 = vpop.f32.mrb[0].mxu0
        %v619 = vadd.f32 0.0, %v618
        %620 = vmatprep.mubr.f32.mxu0 0.0
        %621 = vmatmul.mubr.f32.gmra.mrb[0].mxu0 %v402
        %v622 = vpop.f32.mrb[0].mxu0
        %v623 = vadd.f32 0.0, %v622
        %v624 = vpop.f32.mrb[0].mxu0
        %v625 = vadd.f32 0.0, %v624
        %626 = vmatprep.mubr.f32.mxu0 0.0
        %627 = vmatmul.mubr.f32.gmra.mrb[0].mxu0 %v403
        %v628 = vpop.f32.mrb[0].mxu0
        %v629 = vadd.f32 0.0, %v628
        %v630 = vpop.f32.mrb[0].mxu0
        %v631 = vadd.f32 0.0, %v630
        %632 = vmatprep.mubr.f32.mxu0 0.0
        %633 = vmatmul.mubr.f32.gmra.mrb[0].mxu0 %v404
        %v634 = vpop.f32.mrb[0].mxu0
        %v635 = vadd.f32 0.0, %v634
        %v636 = vpop.f32.mrb[0].mxu0
        %v637 = vadd.f32 0.0, %v636
        %638 = vmatprep.mubr.f32.mxu0 0.0
        %639 = vmatmul.mubr.f32.gmra.mrb[0].mxu0 %v405
        %v640 = vpop.f32.mrb[0].mxu0
        %v641 = vadd.f32 0.0, %v640
        %v642 = vpop.f32.mrb[0].mxu0
        %v643 = vadd.f32 0.0, %v642
        %644 = vmatprep.mubr.f32.mxu0 0.0
        %645 = vmatmul.mubr.f32.gmra.mrb[0].mxu0 %v406
        %v646 = vpop.f32.mrb[0].mxu0
        %v647 = vadd.f32 0.0, %v646
        %v648 = vpop.f32.mrb[0].mxu0
        %v649 = vadd.f32 0.0, %v648
        %650 = vmatprep.mubr.f32.mxu0 0.0
        %651 = vmatmul.mubr.f32.gmra.mrb[0].mxu0 %v407
        %v652 = vpop.f32.mrb[0].mxu0
        %v653 = vadd.f32 0.0, %v652
        %v654 = vpop.f32.mrb[0].mxu0
        %v655 = vadd.f32 0.0, %v654
        %656 = vmatprep.mubr.f32.mxu0 0.0
        %657 = vmatmul.mubr.f32.gmra.mrb[0].mxu0 %v408
        %v658 = vpop.f32.mrb[0].mxu0
        %v659 = vadd.f32 0.0, %v658
        %v660 = vpop.f32.mrb[0].mxu0
        %v661 = vadd.f32 0.0, %v660
        %662 = vmatprep.mubr.f32.mxu0 0.0
        %663 = vmatmul.mubr.f32.gmra.mrb[0].mxu0 %v409
        %v664 = vpop.f32.mrb[0].mxu0
        %v665 = vadd.f32 0.0, %v664
        %v666 = vpop.f32.mrb[0].mxu0
        %v667 = vadd.f32 0.0, %v666
        %668 = vmatprep.mubr.f32.mxu0 0.0
        %669 = vmatmul.mubr.f32.gmra.mrb[0].mxu0 %v410
        %v670 = vpop.f32.mrb[0].mxu0
        %v671 = vadd.f32 0.0, %v670
        %v672 = vpop.f32.mrb[0].mxu0
        %v673 = vadd.f32 0.0, %v672
        %674 = vmatprep.mubr.f32.mxu0 0.0
        %675 = vmatmul.mubr.f32.gmra.mrb[0].mxu0 %v411
        %v676 = vpop.f32.mrb[0].mxu0
        %v677 = vadd.f32 0.0, %v676
        %v678 = vpop.f32.mrb[0].mxu0
        %v679 = vadd.f32 0.0, %v678
        %680 = vmatprep.mubr.f32.mxu0 0.0
        %681 = vmatmul.mubr.f32.gmra.mrb[0].mxu0 %v412
        %v682 = vpop.f32.mrb[0].mxu0
        %v683 = vadd.f32 0.0, %v682
        %v684 = vpop.f32.mrb[0].mxu0
        %v685 = vadd.f32 0.0, %v684
        %686 = vmatprep.mubr.f32.mxu0 0.0
        %687 = vmatmul.mubr.f32.gmra.mrb[0].mxu0 %v413
        %v688 = vpop.f32.mrb[0].mxu0
        %v689 = vadd.f32 0.0, %v688
        %v690 = vpop.f32.mrb[0].mxu0
        %v691 = vadd.f32 0.0, %v690
        %692 = vmatprep.mubr.f32.mxu0 0.0
        %693 = vmatmul.mubr.f32.gmra.mrb[0].mxu0 %v414
        %v694 = vpop.f32.mrb[0].mxu0
        %v695 = vadd.f32 0.0, %v694
        %v696 = vpop.f32.mrb[0].mxu0
        %v697 = vadd.f32 0.0, %v696
        %698 = vmatprep.mubr.f32.mxu0 0.0
        %699 = vmatmul.mubr.f32.gmra.mrb[0].mxu0 %v415
        %v700 = vpop.f32.mrb[0].mxu0
        %v701 = vadd.f32 0.0, %v700
        %v702 = vpop.f32.mrb[0].mxu0
        %v703 = vadd.f32 0.0, %v702
        %704 = vdwg.mxu0
        %v705 = vsub.f32 %v515, %v613
        %v706 = vsub.f32 %v521, %v619
        %v707 = vsub.f32 %v527, %v625
        %v708 = vsub.f32 %v533, %v631
        %v709 = vsub.f32 %v539, %v637
        %v710 = vsub.f32 %v545, %v643
        %v711 = vsub.f32 %v551, %v649
        %v712 = vsub.f32 %v557, %v655
        %v713 = vsub.f32 %v563, %v661
        %v714 = vsub.f32 %v569, %v667
        %v715 = vsub.f32 %v575, %v673
        %v716 = vsub.f32 %v581, %v679
        %v717 = vsub.f32 %v587, %v685
        %v718 = vsub.f32 %v593, %v691
        %v719 = vsub.f32 %v599, %v697
        %v720 = vsub.f32 %v605, %v703
        %v721 = vadd.f32 %v517, %v611
        %v722 = vadd.f32 %v523, %v617
        %v723 = vadd.f32 %v529, %v623
        %v724 = vadd.f32 %v535, %v629
        %v725 = vadd.f32 %v541, %v635
        %v726 = vadd.f32 %v547, %v641
        %v727 = vadd.f32 %v553, %v647
        %v728 = vadd.f32 %v559, %v653
        %v729 = vadd.f32 %v565, %v659
        %v730 = vadd.f32 %v571, %v665
        %v731 = vadd.f32 %v577, %v671
        %v732 = vadd.f32 %v583, %v677
        %v733 = vadd.f32 %v589, %v683
        %v734 = vadd.f32 %v595, %v689
        %v735 = vadd.f32 %v601, %v695
        %v736 = vadd.f32 %v607, %v701
        %v737 = vld [vmem:[#allocation7] sm:$0xff]
        %v738 = vld [vmem:[#allocation7 + $0x8] sm:$0xff]
        %v739 = vld [vmem:[#allocation7 + $0x10] sm:$0xff]
        %v740 = vld [vmem:[#allocation7 + $0x18] sm:$0xff]
        %v741 = vld [vmem:[#allocation7 + $0x20] sm:$0xff]
        %v742 = vld [vmem:[#allocation7 + $0x28] sm:$0xff]
        %v743 = vld [vmem:[#allocation7 + $0x30] sm:$0xff]
        %v744 = vld [vmem:[#allocation7 + $0x38] sm:$0xff]
        %v745 = vld [vmem:[#allocation7 + $0x40] sm:$0xff]
        %v746 = vld [vmem:[#allocation7 + $0x48] sm:$0xff]
        %v747 = vld [vmem:[#allocation7 + $0x50] sm:$0xff]
        %v748 = vld [vmem:[#allocation7 + $0x58] sm:$0xff]
        %v749 = vld [vmem:[#allocation7 + $0x60] sm:$0xff]
        %v750 = vld [vmem:[#allocation7 + $0x68] sm:$0xff]
        %v751 = vld [vmem:[#allocation7 + $0x70] sm:$0xff]
        %v752 = vld [vmem:[#allocation7 + $0x78] sm:$0xff]
        %v753 = vld [vmem:[#allocation7 + $0x80] sm:$0xff]
        %v754 = vld [vmem:[#allocation7 + $0x88] sm:$0xff]
        %v755 = vld [vmem:[#allocation7 + $0x90] sm:$0xff]
        %v756 = vld [vmem:[#allocation7 + $0x98] sm:$0xff]
        %v757 = vld [vmem:[#allocation7 + $0xa0] sm:$0xff]
        %v758 = vld [vmem:[#allocation7 + $0xa8] sm:$0xff]
        %v759 = vld [vmem:[#allocation7 + $0xb0] sm:$0xff]
        %v760 = vld [vmem:[#allocation7 + $0xb8] sm:$0xff]
        %v761 = vld [vmem:[#allocation7 + $0xc0] sm:$0xff]
        %v762 = vld [vmem:[#allocation7 + $0xc8] sm:$0xff]
        %v763 = vld [vmem:[#allocation7 + $0xd0] sm:$0xff]
        %v764 = vld [vmem:[#allocation7 + $0xd8] sm:$0xff]
        %v765 = vld [vmem:[#allocation7 + $0xe0] sm:$0xff]
        %v766 = vld [vmem:[#allocation7 + $0xe8] sm:$0xff]
        %v767 = vld [vmem:[#allocation7 + $0xf0] sm:$0xff]
        %v768 = vld [vmem:[#allocation7 + $0xf8] sm:$0xff]
        %769 = vmatprep.subr.mxu0 0.0
        %770 = vmatpush1.msra.mxu0 %v705
        %771 = vmatprep.subr.mxu0 0.0
        %772 = vmatpush1.msra.mxu0 %v706
        %773 = vmatprep.subr.mxu0 0.0
        %774 = vmatpush1.msra.mxu0 %v707
        %775 = vmatprep.subr.mxu0 0.0
        %776 = vmatpush1.msra.mxu0 %v708
        %777 = vmatprep.subr.mxu0 0.0
        %778 = vmatpush1.msra.mxu0 %v709
        %779 = vmatprep.subr.mxu0 0.0
        %780 = vmatpush1.msra.mxu0 %v710
        %781 = vmatprep.subr.mxu0 0.0
        %782 = vmatpush1.msra.mxu0 %v711
        %783 = vmatprep.subr.mxu0 0.0
        %784 = vmatpush1.msra.mxu0 %v712
        %785 = vmatprep.subr.mxu0 0.0
        %786 = vmatpush1.msra.mxu0 %v713
        %787 = vmatprep.subr.mxu0 0.0
        %788 = vmatpush1.msra.mxu0 %v714
        %789 = vmatprep.subr.mxu0 0.0
        %790 = vmatpush1.msra.mxu0 %v715
        %791 = vmatprep.subr.mxu0 0.0
        %792 = vmatpush1.msra.mxu0 %v716
        %793 = vmatprep.subr.mxu0 0.0
        %794 = vmatpush1.msra.mxu0 %v717
        %795 = vmatprep.subr.mxu0 0.0
        %796 = vmatpush1.msra.mxu0 %v718
        %797 = vmatprep.subr.mxu0 0.0
        %798 = vmatpush1.msra.mxu0 %v719
        %799 = vmatprep.subr.mxu0 0.0
        %800 = vmatpush1.msra.mxu0 %v720
        %801 = vmatprep.subr.mxu0 0.0
        %802 = vmatpush1.msra.mxu0 0.0
        %803 = vmatprep.subr.mxu0 0.0
        %804 = vmatpush1.msra.mxu0 0.0
        %805 = vmatprep.subr.mxu0 0.0
        %806 = vmatpush1.msra.mxu0 0.0
        %807 = vmatprep.subr.mxu0 0.0
        %808 = vmatpush1.msra.mxu0 0.0
        %809 = vmatprep.subr.mxu0 0.0
        %810 = vmatpush1.msra.mxu0 0.0
        %811 = vmatprep.subr.mxu0 0.0
        %812 = vmatpush1.msra.mxu0 0.0
        %813 = vmatprep.subr.mxu0 0.0
        %814 = vmatpush1.msra.mxu0 0.0
        %815 = vmatprep.subr.mxu0 0.0
        %816 = vmatpush1.msra.mxu0 0.0
        %817 = vmatprep.subr.mxu0 0.0
        %818 = vmatpush1.msra.mxu0 0.0
        %819 = vmatprep.subr.mxu0 0.0
        %820 = vmatpush1.msra.mxu0 0.0
        %821 = vmatprep.subr.mxu0 0.0
        %822 = vmatpush1.msra.mxu0 0.0
        %823 = vmatprep.subr.mxu0 0.0
        %824 = vmatpush1.msra.mxu0 0.0
        %825 = vmatprep.subr.mxu0 0.0
        %826 = vmatpush1.msra.mxu0 0.0
        %827 = vmatprep.subr.mxu0 0.0
        %828 = vmatpush1.msra.mxu0 0.0
        %829 = vmatprep.subr.mxu0 0.0
        %830 = vmatpush1.msra.mxu0 0.0
        %831 = vmatprep.subr.mxu0 0.0
        %832 = vmatpush1.msra.mxu0 0.0
        %833 = vmatprep.mubr.f32.mxu0 0.0
        %834 = vmatmul.mubr.f32.gmra.mrb[0].mxu0 %v737
        %v835 = vpop.f32.mrb[0].mxu0
        %v836 = vadd.f32 0.0, %v835
        %v837 = vpop.f32.mrb[0].mxu0
        %838 = vmatprep.mubr.f32.mxu0 0.0
        %839 = vmatmul.mubr.f32.gmra.mrb[0].mxu0 %v738
        %v840 = vpop.f32.mrb[0].mxu0
        %v841 = vadd.f32 0.0, %v840
        %v842 = vpop.f32.mrb[0].mxu0
        %843 = vmatprep.mubr.f32.mxu0 0.0
        %844 = vmatmul.mubr.f32.gmra.mrb[0].mxu0 %v739
        %v845 = vpop.f32.mrb[0].mxu0
        %v846 = vadd.f32 0.0, %v845
        %v847 = vpop.f32.mrb[0].mxu0
        %848 = vmatprep.mubr.f32.mxu0 0.0
        %849 = vmatmul.mubr.f32.gmra.mrb[0].mxu0 %v740
        %v850 = vpop.f32.mrb[0].mxu0
        %v851 = vadd.f32 0.0, %v850
        %v852 = vpop.f32.mrb[0].mxu0
        %853 = vmatprep.mubr.f32.mxu0 0.0
        %854 = vmatmul.mubr.f32.gmra.mrb[0].mxu0 %v741
        %v855 = vpop.f32.mrb[0].mxu0
        %v856 = vadd.f32 0.0, %v855
        %v857 = vpop.f32.mrb[0].mxu0
        %858 = vmatprep.mubr.f32.mxu0 0.0
        %859 = vmatmul.mubr.f32.gmra.mrb[0].mxu0 %v742
        %v860 = vpop.f32.mrb[0].mxu0
        %v861 = vadd.f32 0.0, %v860
        %v862 = vpop.f32.mrb[0].mxu0
        %863 = vmatprep.mubr.f32.mxu0 0.0
        %864 = vmatmul.mubr.f32.gmra.mrb[0].mxu0 %v743
        %v865 = vpop.f32.mrb[0].mxu0
        %v866 = vadd.f32 0.0, %v865
        %v867 = vpop.f32.mrb[0].mxu0
        %868 = vmatprep.mubr.f32.mxu0 0.0
        %869 = vmatmul.mubr.f32.gmra.mrb[0].mxu0 %v744
        %v870 = vpop.f32.mrb[0].mxu0
        %v871 = vadd.f32 0.0, %v870
        %v872 = vpop.f32.mrb[0].mxu0
        %873 = vmatprep.mubr.f32.mxu0 0.0
        %874 = vmatmul.mubr.f32.gmra.mrb[0].mxu0 %v745
        %v875 = vpop.f32.mrb[0].mxu0
        %v876 = vadd.f32 0.0, %v875
        %v877 = vpop.f32.mrb[0].mxu0
        %878 = vmatprep.mubr.f32.mxu0 0.0
        %879 = vmatmul.mubr.f32.gmra.mrb[0].mxu0 %v746
        %v880 = vpop.f32.mrb[0].mxu0
        %v881 = vadd.f32 0.0, %v880
        %v882 = vpop.f32.mrb[0].mxu0
        %883 = vmatprep.mubr.f32.mxu0 0.0
        %884 = vmatmul.mubr.f32.gmra.mrb[0].mxu0 %v747
        %v885 = vpop.f32.mrb[0].mxu0
        %v886 = vadd.f32 0.0, %v885
        %v887 = vpop.f32.mrb[0].mxu0
        %888 = vmatprep.mubr.f32.mxu0 0.0
        %889 = vmatmul.mubr.f32.gmra.mrb[0].mxu0 %v748
        %v890 = vpop.f32.mrb[0].mxu0
        %v891 = vadd.f32 0.0, %v890
        %v892 = vpop.f32.mrb[0].mxu0
        %893 = vmatprep.mubr.f32.mxu0 0.0
        %894 = vmatmul.mubr.f32.gmra.mrb[0].mxu0 %v749
        %v895 = vpop.f32.mrb[0].mxu0
        %v896 = vadd.f32 0.0, %v895
        %v897 = vpop.f32.mrb[0].mxu0
        %898 = vmatprep.mubr.f32.mxu0 0.0
        %899 = vmatmul.mubr.f32.gmra.mrb[0].mxu0 %v750
        %v900 = vpop.f32.mrb[0].mxu0
        %v901 = vadd.f32 0.0, %v900
        %v902 = vpop.f32.mrb[0].mxu0
        %903 = vmatprep.mubr.f32.mxu0 0.0
        %904 = vmatmul.mubr.f32.gmra.mrb[0].mxu0 %v751
        %v905 = vpop.f32.mrb[0].mxu0
        %v906 = vadd.f32 0.0, %v905
        %v907 = vpop.f32.mrb[0].mxu0
        %908 = vmatprep.mubr.f32.mxu0 0.0
        %909 = vmatmul.mubr.f32.gmra.mrb[0].mxu0 %v752
        %v910 = vpop.f32.mrb[0].mxu0
        %v911 = vadd.f32 0.0, %v910
        %v912 = vpop.f32.mrb[0].mxu0
        %913 = vmatprep.mubr.f32.mxu0 0.0
        %914 = vmatmul.mubr.f32.gmra.mrb[0].mxu0 %v753
        %v915 = vpop.f32.mrb[0].mxu0
        %v916 = vadd.f32 0.0, %v915
        %v917 = vpop.f32.mrb[0].mxu0
        %918 = vmatprep.mubr.f32.mxu0 0.0
        %919 = vmatmul.mubr.f32.gmra.mrb[0].mxu0 %v754
        %v920 = vpop.f32.mrb[0].mxu0
        %v921 = vadd.f32 0.0, %v920
        %v922 = vpop.f32.mrb[0].mxu0
        %923 = vmatprep.mubr.f32.mxu0 0.0
        %924 = vmatmul.mubr.f32.gmra.mrb[0].mxu0 %v755
        %v925 = vpop.f32.mrb[0].mxu0
        %v926 = vadd.f32 0.0, %v925
        %v927 = vpop.f32.mrb[0].mxu0
        %928 = vmatprep.mubr.f32.mxu0 0.0
        %929 = vmatmul.mubr.f32.gmra.mrb[0].mxu0 %v756
        %v930 = vpop.f32.mrb[0].mxu0
        %v931 = vadd.f32 0.0, %v930
        %v932 = vpop.f32.mrb[0].mxu0
        %933 = vmatprep.mubr.f32.mxu0 0.0
        %934 = vmatmul.mubr.f32.gmra.mrb[0].mxu0 %v757
        %v935 = vpop.f32.mrb[0].mxu0
        %v936 = vadd.f32 0.0, %v935
        %v937 = vpop.f32.mrb[0].mxu0
        %938 = vmatprep.mubr.f32.mxu0 0.0
        %939 = vmatmul.mubr.f32.gmra.mrb[0].mxu0 %v758
        %v940 = vpop.f32.mrb[0].mxu0
        %v941 = vadd.f32 0.0, %v940
        %v942 = vpop.f32.mrb[0].mxu0
        %943 = vmatprep.mubr.f32.mxu0 0.0
        %944 = vmatmul.mubr.f32.gmra.mrb[0].mxu0 %v759
        %v945 = vpop.f32.mrb[0].mxu0
        %v946 = vadd.f32 0.0, %v945
        %v947 = vpop.f32.mrb[0].mxu0
        %948 = vmatprep.mubr.f32.mxu0 0.0
        %949 = vmatmul.mubr.f32.gmra.mrb[0].mxu0 %v760
        %v950 = vpop.f32.mrb[0].mxu0
        %v951 = vadd.f32 0.0, %v950
        %v952 = vpop.f32.mrb[0].mxu0
        %953 = vmatprep.mubr.f32.mxu0 0.0
        %954 = vmatmul.mubr.f32.gmra.mrb[0].mxu0 %v761
        %v955 = vpop.f32.mrb[0].mxu0
        %v956 = vadd.f32 0.0, %v955
        %v957 = vpop.f32.mrb[0].mxu0
        %958 = vmatprep.mubr.f32.mxu0 0.0
        %959 = vmatmul.mubr.f32.gmra.mrb[0].mxu0 %v762
        %v960 = vpop.f32.mrb[0].mxu0
        %v961 = vadd.f32 0.0, %v960
        %v962 = vpop.f32.mrb[0].mxu0
        %963 = vmatprep.mubr.f32.mxu0 0.0
        %964 = vmatmul.mubr.f32.gmra.mrb[0].mxu0 %v763
        %v965 = vpop.f32.mrb[0].mxu0
        %v966 = vadd.f32 0.0, %v965
        %v967 = vpop.f32.mrb[0].mxu0
        %968 = vmatprep.mubr.f32.mxu0 0.0
        %969 = vmatmul.mubr.f32.gmra.mrb[0].mxu0 %v764
        %v970 = vpop.f32.mrb[0].mxu0
        %v971 = vadd.f32 0.0, %v970
        %v972 = vpop.f32.mrb[0].mxu0
        %973 = vmatprep.mubr.f32.mxu0 0.0
        %974 = vmatmul.mubr.f32.gmra.mrb[0].mxu0 %v765
        %v975 = vpop.f32.mrb[0].mxu0
        %v976 = vadd.f32 0.0, %v975
        %v977 = vpop.f32.mrb[0].mxu0
        %978 = vmatprep.mubr.f32.mxu0 0.0
        %979 = vmatmul.mubr.f32.gmra.mrb[0].mxu0 %v766
        %v980 = vpop.f32.mrb[0].mxu0
        %v981 = vadd.f32 0.0, %v980
        %v982 = vpop.f32.mrb[0].mxu0
        %983 = vmatprep.mubr.f32.mxu0 0.0
        %984 = vmatmul.mubr.f32.gmra.mrb[0].mxu0 %v767
        %v985 = vpop.f32.mrb[0].mxu0
        %v986 = vadd.f32 0.0, %v985
        %v987 = vpop.f32.mrb[0].mxu0
        %988 = vmatprep.mubr.f32.mxu0 0.0
        %989 = vmatmul.mubr.f32.gmra.mrb[0].mxu0 %v768
        %v990 = vpop.f32.mrb[0].mxu0
        %v991 = vadd.f32 0.0, %v990
        %v992 = vpop.f32.mrb[0].mxu0
        %993 = vdwg.mxu0
        %994 = vmatprep.subr.mxu0 0.0
        %995 = vmatpush1.msra.mxu0 %v721
        %996 = vmatprep.subr.mxu0 0.0
        %997 = vmatpush1.msra.mxu0 %v722
        %998 = vmatprep.subr.mxu0 0.0
        %999 = vmatpush1.msra.mxu0 %v723
        %1000 = vmatprep.subr.mxu0 0.0
        %1001 = vmatpush1.msra.mxu0 %v724
        %1002 = vmatprep.subr.mxu0 0.0
        %1003 = vmatpush1.msra.mxu0 %v725
        %1004 = vmatprep.subr.mxu0 0.0
        %1005 = vmatpush1.msra.mxu0 %v726
        %1006 = vmatprep.subr.mxu0 0.0
        %1007 = vmatpush1.msra.mxu0 %v727
        %1008 = vmatprep.subr.mxu0 0.0
        %1009 = vmatpush1.msra.mxu0 %v728
        %1010 = vmatprep.subr.mxu0 0.0
        %1011 = vmatpush1.msra.mxu0 %v729
        %1012 = vmatprep.subr.mxu0 0.0
        %1013 = vmatpush1.msra.mxu0 %v730
        %1014 = vmatprep.subr.mxu0 0.0
        %1015 = vmatpush1.msra.mxu0 %v731
        %1016 = vmatprep.subr.mxu0 0.0
        %1017 = vmatpush1.msra.mxu0 %v732
        %1018 = vmatprep.subr.mxu0 0.0
        %1019 = vmatpush1.msra.mxu0 %v733
        %1020 = vmatprep.subr.mxu0 0.0
        %1021 = vmatpush1.msra.mxu0 %v734
        %1022 = vmatprep.subr.mxu0 0.0
        %1023 = vmatpush1.msra.mxu0 %v735
        %1024 = vmatprep.subr.mxu0 0.0
        %1025 = vmatpush1.msra.mxu0 %v736
        %1026 = vmatprep.subr.mxu0 0.0
        %1027 = vmatpush1.msra.mxu0 0.0
        %1028 = vmatprep.subr.mxu0 0.0
        %1029 = vmatpush1.msra.mxu0 0.0
        %1030 = vmatprep.subr.mxu0 0.0
        %1031 = vmatpush1.msra.mxu0 0.0
        %1032 = vmatprep.subr.mxu0 0.0
        %1033 = vmatpush1.msra.mxu0 0.0
        %1034 = vmatprep.subr.mxu0 0.0
        %1035 = vmatpush1.msra.mxu0 0.0
        %1036 = vmatprep.subr.mxu0 0.0
        %1037 = vmatpush1.msra.mxu0 0.0
        %1038 = vmatprep.subr.mxu0 0.0
        %1039 = vmatpush1.msra.mxu0 0.0
        %1040 = vmatprep.subr.mxu0 0.0
        %1041 = vmatpush1.msra.mxu0 0.0
        %1042 = vmatprep.subr.mxu0 0.0
        %1043 = vmatpush1.msra.mxu0 0.0
        %1044 = vmatprep.subr.mxu0 0.0
        %1045 = vmatpush1.msra.mxu0 0.0
        %1046 = vmatprep.subr.mxu0 0.0
        %1047 = vmatpush1.msra.mxu0 0.0
        %1048 = vmatprep.subr.mxu0 0.0
        %1049 = vmatpush1.msra.mxu0 0.0
        %1050 = vmatprep.subr.mxu0 0.0
        %1051 = vmatpush1.msra.mxu0 0.0
        %1052 = vmatprep.subr.mxu0 0.0
        %1053 = vmatpush1.msra.mxu0 0.0
        %1054 = vmatprep.subr.mxu0 0.0
        %1055 = vmatpush1.msra.mxu0 0.0
        %1056 = vmatprep.subr.mxu0 0.0
        %1057 = vmatpush1.msra.mxu0 0.0
        %1058 = vmatprep.mubr.f32.mxu0 0.0
        %1059 = vmatmul.mubr.f32.gmra.mrb[0].mxu0 %v737
        %v1060 = vpop.f32.mrb[0].mxu0
        %v1061 = vadd.f32 0.0, %v1060
        %v1062 = vpop.f32.mrb[0].mxu0
        %1063 = vmatprep.mubr.f32.mxu0 0.0
        %1064 = vmatmul.mubr.f32.gmra.mrb[0].mxu0 %v738
        %v1065 = vpop.f32.mrb[0].mxu0
        %v1066 = vadd.f32 0.0, %v1065
        %v1067 = vpop.f32.mrb[0].mxu0
        %1068 = vmatprep.mubr.f32.mxu0 0.0
        %1069 = vmatmul.mubr.f32.gmra.mrb[0].mxu0 %v739
        %v1070 = vpop.f32.mrb[0].mxu0
        %v1071 = vadd.f32 0.0, %v1070
        %v1072 = vpop.f32.mrb[0].mxu0
        %1073 = vmatprep.mubr.f32.mxu0 0.0
        %1074 = vmatmul.mubr.f32.gmra.mrb[0].mxu0 %v740
        %v1075 = vpop.f32.mrb[0].mxu0
        %v1076 = vadd.f32 0.0, %v1075
        %v1077 = vpop.f32.mrb[0].mxu0
        %1078 = vmatprep.mubr.f32.mxu0 0.0
        %1079 = vmatmul.mubr.f32.gmra.mrb[0].mxu0 %v741
        %v1080 = vpop.f32.mrb[0].mxu0
        %v1081 = vadd.f32 0.0, %v1080
        %v1082 = vpop.f32.mrb[0].mxu0
        %1083 = vmatprep.mubr.f32.mxu0 0.0
        %1084 = vmatmul.mubr.f32.gmra.mrb[0].mxu0 %v742
        %v1085 = vpop.f32.mrb[0].mxu0
        %v1086 = vadd.f32 0.0, %v1085
        %v1087 = vpop.f32.mrb[0].mxu0
        %1088 = vmatprep.mubr.f32.mxu0 0.0
        %1089 = vmatmul.mubr.f32.gmra.mrb[0].mxu0 %v743
        %v1090 = vpop.f32.mrb[0].mxu0
        %v1091 = vadd.f32 0.0, %v1090
        %v1092 = vpop.f32.mrb[0].mxu0
        %1093 = vmatprep.mubr.f32.mxu0 0.0
        %1094 = vmatmul.mubr.f32.gmra.mrb[0].mxu0 %v744
        %v1095 = vpop.f32.mrb[0].mxu0
        %v1096 = vadd.f32 0.0, %v1095
        %v1097 = vpop.f32.mrb[0].mxu0
        %1098 = vmatprep.mubr.f32.mxu0 0.0
        %1099 = vmatmul.mubr.f32.gmra.mrb[0].mxu0 %v745
        %v1100 = vpop.f32.mrb[0].mxu0
        %v1101 = vadd.f32 0.0, %v1100
        %v1102 = vpop.f32.mrb[0].mxu0
        %1103 = vmatprep.mubr.f32.mxu0 0.0
        %1104 = vmatmul.mubr.f32.gmra.mrb[0].mxu0 %v746
        %v1105 = vpop.f32.mrb[0].mxu0
        %v1106 = vadd.f32 0.0, %v1105
        %v1107 = vpop.f32.mrb[0].mxu0
        %1108 = vmatprep.mubr.f32.mxu0 0.0
        %1109 = vmatmul.mubr.f32.gmra.mrb[0].mxu0 %v747
        %v1110 = vpop.f32.mrb[0].mxu0
        %v1111 = vadd.f32 0.0, %v1110
        %v1112 = vpop.f32.mrb[0].mxu0
        %1113 = vmatprep.mubr.f32.mxu0 0.0
        %1114 = vmatmul.mubr.f32.gmra.mrb[0].mxu0 %v748
        %v1115 = vpop.f32.mrb[0].mxu0
        %v1116 = vadd.f32 0.0, %v1115
        %v1117 = vpop.f32.mrb[0].mxu0
        %1118 = vmatprep.mubr.f32.mxu0 0.0
        %1119 = vmatmul.mubr.f32.gmra.mrb[0].mxu0 %v749
        %v1120 = vpop.f32.mrb[0].mxu0
        %v1121 = vadd.f32 0.0, %v1120
        %v1122 = vpop.f32.mrb[0].mxu0
        %1123 = vmatprep.mubr.f32.mxu0 0.0
        %1124 = vmatmul.mubr.f32.gmra.mrb[0].mxu0 %v750
        %v1125 = vpop.f32.mrb[0].mxu0
        %v1126 = vadd.f32 0.0, %v1125
        %v1127 = vpop.f32.mrb[0].mxu0
        %1128 = vmatprep.mubr.f32.mxu0 0.0
        %1129 = vmatmul.mubr.f32.gmra.mrb[0].mxu0 %v751
        %v1130 = vpop.f32.mrb[0].mxu0
        %v1131 = vadd.f32 0.0, %v1130
        %v1132 = vpop.f32.mrb[0].mxu0
        %1133 = vmatprep.mubr.f32.mxu0 0.0
        %1134 = vmatmul.mubr.f32.gmra.mrb[0].mxu0 %v752
        %v1135 = vpop.f32.mrb[0].mxu0
        %v1136 = vadd.f32 0.0, %v1135
        %v1137 = vpop.f32.mrb[0].mxu0
        %1138 = vmatprep.mubr.f32.mxu0 0.0
        %1139 = vmatmul.mubr.f32.gmra.mrb[0].mxu0 %v753
        %v1140 = vpop.f32.mrb[0].mxu0
        %v1141 = vadd.f32 0.0, %v1140
        %v1142 = vpop.f32.mrb[0].mxu0
        %1143 = vmatprep.mubr.f32.mxu0 0.0
        %1144 = vmatmul.mubr.f32.gmra.mrb[0].mxu0 %v754
        %v1145 = vpop.f32.mrb[0].mxu0
        %v1146 = vadd.f32 0.0, %v1145
        %v1147 = vpop.f32.mrb[0].mxu0
        %1148 = vmatprep.mubr.f32.mxu0 0.0
        %1149 = vmatmul.mubr.f32.gmra.mrb[0].mxu0 %v755
        %v1150 = vpop.f32.mrb[0].mxu0
        %v1151 = vadd.f32 0.0, %v1150
        %v1152 = vpop.f32.mrb[0].mxu0
        %1153 = vmatprep.mubr.f32.mxu0 0.0
        %1154 = vmatmul.mubr.f32.gmra.mrb[0].mxu0 %v756
        %v1155 = vpop.f32.mrb[0].mxu0
        %v1156 = vadd.f32 0.0, %v1155
        %v1157 = vpop.f32.mrb[0].mxu0
        %1158 = vmatprep.mubr.f32.mxu0 0.0
        %1159 = vmatmul.mubr.f32.gmra.mrb[0].mxu0 %v757
        %v1160 = vpop.f32.mrb[0].mxu0
        %v1161 = vadd.f32 0.0, %v1160
        %v1162 = vpop.f32.mrb[0].mxu0
        %1163 = vmatprep.mubr.f32.mxu0 0.0
        %1164 = vmatmul.mubr.f32.gmra.mrb[0].mxu0 %v758
        %v1165 = vpop.f32.mrb[0].mxu0
        %v1166 = vadd.f32 0.0, %v1165
        %v1167 = vpop.f32.mrb[0].mxu0
        %1168 = vmatprep.mubr.f32.mxu0 0.0
        %1169 = vmatmul.mubr.f32.gmra.mrb[0].mxu0 %v759
        %v1170 = vpop.f32.mrb[0].mxu0
        %v1171 = vadd.f32 0.0, %v1170
        %v1172 = vpop.f32.mrb[0].mxu0
        %1173 = vmatprep.mubr.f32.mxu0 0.0
        %1174 = vmatmul.mubr.f32.gmra.mrb[0].mxu0 %v760
        %v1175 = vpop.f32.mrb[0].mxu0
        %v1176 = vadd.f32 0.0, %v1175
        %v1177 = vpop.f32.mrb[0].mxu0
        %1178 = vmatprep.mubr.f32.mxu0 0.0
        %1179 = vmatmul.mubr.f32.gmra.mrb[0].mxu0 %v761
        %v1180 = vpop.f32.mrb[0].mxu0
        %v1181 = vadd.f32 0.0, %v1180
        %v1182 = vpop.f32.mrb[0].mxu0
        %1183 = vmatprep.mubr.f32.mxu0 0.0
        %1184 = vmatmul.mubr.f32.gmra.mrb[0].mxu0 %v762
        %v1185 = vpop.f32.mrb[0].mxu0
        %v1186 = vadd.f32 0.0, %v1185
        %v1187 = vpop.f32.mrb[0].mxu0
        %1188 = vmatprep.mubr.f32.mxu0 0.0
        %1189 = vmatmul.mubr.f32.gmra.mrb[0].mxu0 %v763
        %v1190 = vpop.f32.mrb[0].mxu0
        %v1191 = vadd.f32 0.0, %v1190
        %v1192 = vpop.f32.mrb[0].mxu0
        %1193 = vmatprep.mubr.f32.mxu0 0.0
        %1194 = vmatmul.mubr.f32.gmra.mrb[0].mxu0 %v764
        %v1195 = vpop.f32.mrb[0].mxu0
        %v1196 = vadd.f32 0.0, %v1195
        %v1197 = vpop.f32.mrb[0].mxu0
        %1198 = vmatprep.mubr.f32.mxu0 0.0
        %1199 = vmatmul.mubr.f32.gmra.mrb[0].mxu0 %v765
        %v1200 = vpop.f32.mrb[0].mxu0
        %v1201 = vadd.f32 0.0, %v1200
        %v1202 = vpop.f32.mrb[0].mxu0
        %1203 = vmatprep.mubr.f32.mxu0 0.0
        %1204 = vmatmul.mubr.f32.gmra.mrb[0].mxu0 %v766
        %v1205 = vpop.f32.mrb[0].mxu0
        %v1206 = vadd.f32 0.0, %v1205
        %v1207 = vpop.f32.mrb[0].mxu0
        %1208 = vmatprep.mubr.f32.mxu0 0.0
        %1209 = vmatmul.mubr.f32.gmra.mrb[0].mxu0 %v767
        %v1210 = vpop.f32.mrb[0].mxu0
        %v1211 = vadd.f32 0.0, %v1210
        %v1212 = vpop.f32.mrb[0].mxu0
        %1213 = vmatprep.mubr.f32.mxu0 0.0
        %1214 = vmatmul.mubr.f32.gmra.mrb[0].mxu0 %v768
        %v1215 = vpop.f32.mrb[0].mxu0
        %v1216 = vadd.f32 0.0, %v1215
        %v1217 = vpop.f32.mrb[0].mxu0
        %1218 = vdwg.mxu0
        %v1219 = vsub.f32 %v836, %v1141
        %v1220 = vsub.f32 %v841, %v1146
        %v1221 = vsub.f32 %v846, %v1151
        %v1222 = vsub.f32 %v851, %v1156
        %v1223 = vsub.f32 %v856, %v1161
        %v1224 = vsub.f32 %v861, %v1166
        %v1225 = vsub.f32 %v866, %v1171
        %v1226 = vsub.f32 %v871, %v1176
        %v1227 = vsub.f32 %v876, %v1181
        %v1228 = vsub.f32 %v881, %v1186
        %v1229 = vsub.f32 %v886, %v1191
        %v1230 = vsub.f32 %v891, %v1196
        %v1231 = vsub.f32 %v896, %v1201
        %v1232 = vsub.f32 %v901, %v1206
        %v1233 = vsub.f32 %v906, %v1211
        %v1234 = vsub.f32 %v911, %v1216
        %v1235 = vadd.f32 %v1061, %v916
        %v1236 = vadd.f32 %v1066, %v921
        %v1237 = vadd.f32 %v1071, %v926
        %v1238 = vadd.f32 %v1076, %v931
        %v1239 = vadd.f32 %v1081, %v936
        %v1240 = vadd.f32 %v1086, %v941
        %v1241 = vadd.f32 %v1091, %v946
        %v1242 = vadd.f32 %v1096, %v951
        %v1243 = vadd.f32 %v1101, %v956
        %v1244 = vadd.f32 %v1106, %v961
        %v1245 = vadd.f32 %v1111, %v966
        %v1246 = vadd.f32 %v1116, %v971
        %v1247 = vadd.f32 %v1121, %v976
        %v1248 = vadd.f32 %v1126, %v981
        %v1249 = vadd.f32 %v1131, %v986
        %v1250 = vadd.f32 %v1136, %v991
        %v1251 = vld [vmem:[#allocation8] sm:$0xff]
        %v1252 = vld [vmem:[#allocation8 + $0x8] sm:$0xff]
        %v1253 = vld [vmem:[#allocation8 + $0x10] sm:$0xff]
        %v1254 = vld [vmem:[#allocation8 + $0x18] sm:$0xff]
        %v1255 = vld [vmem:[#allocation8 + $0x20] sm:$0xff]
        %v1256 = vld [vmem:[#allocation8 + $0x28] sm:$0xff]
        %v1257 = vld [vmem:[#allocation8 + $0x30] sm:$0xff]
        %v1258 = vld [vmem:[#allocation8 + $0x38] sm:$0xff]
        %v1259 = vld [vmem:[#allocation8 + $0x40] sm:$0xff]
        %v1260 = vld [vmem:[#allocation8 + $0x48] sm:$0xff]
        %v1261 = vld [vmem:[#allocation8 + $0x50] sm:$0xff]
        %v1262 = vld [vmem:[#allocation8 + $0x58] sm:$0xff]
        %v1263 = vld [vmem:[#allocation8 + $0x60] sm:$0xff]
        %v1264 = vld [vmem:[#allocation8 + $0x68] sm:$0xff]
        %v1265 = vld [vmem:[#allocation8 + $0x70] sm:$0xff]
        %v1266 = vld [vmem:[#allocation8 + $0x78] sm:$0xff]
        %v1267 = vld [vmem:[#allocation10] sm:$0xff]
        %v1268 = vld [vmem:[#allocation10 + $0x8] sm:$0xff]
        %v1269 = vld [vmem:[#allocation10 + $0x10] sm:$0xff]
        %v1270 = vld [vmem:[#allocation10 + $0x18] sm:$0xff]
        %v1271 = vld [vmem:[#allocation10 + $0x20] sm:$0xff]
        %v1272 = vld [vmem:[#allocation10 + $0x28] sm:$0xff]
        %v1273 = vld [vmem:[#allocation10 + $0x30] sm:$0xff]
        %v1274 = vld [vmem:[#allocation10 + $0x38] sm:$0xff]
        %v1275 = vld [vmem:[#allocation10 + $0x40] sm:$0xff]
        %v1276 = vld [vmem:[#allocation10 + $0x48] sm:$0xff]
        %v1277 = vld [vmem:[#allocation10 + $0x50] sm:$0xff]
        %v1278 = vld [vmem:[#allocation10 + $0x58] sm:$0xff]
        %v1279 = vld [vmem:[#allocation10 + $0x60] sm:$0xff]
        %v1280 = vld [vmem:[#allocation10 + $0x68] sm:$0xff]
        %v1281 = vld [vmem:[#allocation10 + $0x70] sm:$0xff]
        %v1282 = vld [vmem:[#allocation10 + $0x78] sm:$0xff]
        %v1283 = vmul.f32 %v1219, %v1251
        %v1284 = vmul.f32 %v1220, %v1252
        %v1285 = vmul.f32 %v1221, %v1253
        %v1286 = vmul.f32 %v1222, %v1254
        %v1287 = vmul.f32 %v1223, %v1255
        %v1288 = vmul.f32 %v1224, %v1256
        %v1289 = vmul.f32 %v1225, %v1257
        %v1290 = vmul.f32 %v1226, %v1258
        %v1291 = vmul.f32 %v1227, %v1259
        %v1292 = vmul.f32 %v1228, %v1260
        %v1293 = vmul.f32 %v1229, %v1261
        %v1294 = vmul.f32 %v1230, %v1262
        %v1295 = vmul.f32 %v1231, %v1263
        %v1296 = vmul.f32 %v1232, %v1264
        %v1297 = vmul.f32 %v1233, %v1265
        %v1298 = vmul.f32 %v1234, %v1266
        %v1299 = vmul.f32 %v1235, %v1267
        %v1300 = vmul.f32 %v1236, %v1268
        %v1301 = vmul.f32 %v1237, %v1269
        %v1302 = vmul.f32 %v1238, %v1270
        %v1303 = vmul.f32 %v1239, %v1271
        %v1304 = vmul.f32 %v1240, %v1272
        %v1305 = vmul.f32 %v1241, %v1273
        %v1306 = vmul.f32 %v1242, %v1274
        %v1307 = vmul.f32 %v1243, %v1275
        %v1308 = vmul.f32 %v1244, %v1276
        %v1309 = vmul.f32 %v1245, %v1277
        %v1310 = vmul.f32 %v1246, %v1278
        %v1311 = vmul.f32 %v1247, %v1279
        %v1312 = vmul.f32 %v1248, %v1280
        %v1313 = vmul.f32 %v1249, %v1281
        %v1314 = vmul.f32 %v1250, %v1282
        %v1315 = vsub.f32 %v1283, %v1299
        %v1316 = vsub.f32 %v1284, %v1300
        %v1317 = vsub.f32 %v1285, %v1301
        %v1318 = vsub.f32 %v1286, %v1302
        %v1319 = vsub.f32 %v1287, %v1303
        %v1320 = vsub.f32 %v1288, %v1304
        %v1321 = vsub.f32 %v1289, %v1305
        %v1322 = vsub.f32 %v1290, %v1306
        %v1323 = vsub.f32 %v1291, %v1307
        %v1324 = vsub.f32 %v1292, %v1308
        %v1325 = vsub.f32 %v1293, %v1309
        %v1326 = vsub.f32 %v1294, %v1310
        %v1327 = vsub.f32 %v1295, %v1311
        %v1328 = vsub.f32 %v1296, %v1312
        %v1329 = vsub.f32 %v1297, %v1313
        %v1330 = vsub.f32 %v1298, %v1314
        %v1331 = vmul.f32 %v1219, %v1267
        %v1332 = vmul.f32 %v1220, %v1268
        %v1333 = vmul.f32 %v1221, %v1269
        %v1334 = vmul.f32 %v1222, %v1270
        %v1335 = vmul.f32 %v1223, %v1271
        %v1336 = vmul.f32 %v1224, %v1272
        %v1337 = vmul.f32 %v1225, %v1273
        %v1338 = vmul.f32 %v1226, %v1274
        %v1339 = vmul.f32 %v1227, %v1275
        %v1340 = vmul.f32 %v1228, %v1276
        %v1341 = vmul.f32 %v1229, %v1277
        %v1342 = vmul.f32 %v1230, %v1278
        %v1343 = vmul.f32 %v1231, %v1279
        %v1344 = vmul.f32 %v1232, %v1280
        %v1345 = vmul.f32 %v1233, %v1281
        %v1346 = vmul.f32 %v1234, %v1282
        %v1347 = vmul.f32 %v1235, %v1251
        %v1348 = vmul.f32 %v1236, %v1252
        %v1349 = vmul.f32 %v1237, %v1253
        %v1350 = vmul.f32 %v1238, %v1254
        %v1351 = vmul.f32 %v1239, %v1255
        %v1352 = vmul.f32 %v1240, %v1256
        %v1353 = vmul.f32 %v1241, %v1257
        %v1354 = vmul.f32 %v1242, %v1258
        %v1355 = vmul.f32 %v1243, %v1259
        %v1356 = vmul.f32 %v1244, %v1260
        %v1357 = vmul.f32 %v1245, %v1261
        %v1358 = vmul.f32 %v1246, %v1262
        %v1359 = vmul.f32 %v1247, %v1263
        %v1360 = vmul.f32 %v1248, %v1264
        %v1361 = vmul.f32 %v1249, %v1265
        %v1362 = vmul.f32 %v1250, %v1266
        %v1363 = vadd.f32 %v1331, %v1347
        %v1364 = vadd.f32 %v1332, %v1348
        %v1365 = vadd.f32 %v1333, %v1349
        %v1366 = vadd.f32 %v1334, %v1350
        %v1367 = vadd.f32 %v1335, %v1351
        %v1368 = vadd.f32 %v1336, %v1352
        %v1369 = vadd.f32 %v1337, %v1353
        %v1370 = vadd.f32 %v1338, %v1354
        %v1371 = vadd.f32 %v1339, %v1355
        %v1372 = vadd.f32 %v1340, %v1356
        %v1373 = vadd.f32 %v1341, %v1357
        %v1374 = vadd.f32 %v1342, %v1358
        %v1375 = vadd.f32 %v1343, %v1359
        %v1376 = vadd.f32 %v1344, %v1360
        %v1377 = vadd.f32 %v1345, %v1361
        %v1378 = vadd.f32 %v1346, %v1362
        %v1379 = vld [vmem:[#allocation11] sm:$0xff]
        %v1380 = vld [vmem:[#allocation11 + $0x8] sm:$0xff]
        %v1381 = vld [vmem:[#allocation11 + $0x10] sm:$0xff]
        %v1382 = vld [vmem:[#allocation11 + $0x18] sm:$0xff]
        %v1383 = vld [vmem:[#allocation11 + $0x20] sm:$0xff]
        %v1384 = vld [vmem:[#allocation11 + $0x28] sm:$0xff]
        %v1385 = vld [vmem:[#allocation11 + $0x30] sm:$0xff]
        %v1386 = vld [vmem:[#allocation11 + $0x38] sm:$0xff]
        %v1387 = vld [vmem:[#allocation11 + $0x40] sm:$0xff]
        %v1388 = vld [vmem:[#allocation11 + $0x48] sm:$0xff]
        %v1389 = vld [vmem:[#allocation11 + $0x50] sm:$0xff]
        %v1390 = vld [vmem:[#allocation11 + $0x58] sm:$0xff]
        %v1391 = vld [vmem:[#allocation11 + $0x60] sm:$0xff]
        %v1392 = vld [vmem:[#allocation11 + $0x68] sm:$0xff]
        %v1393 = vld [vmem:[#allocation11 + $0x70] sm:$0xff]
        %v1394 = vld [vmem:[#allocation11 + $0x78] sm:$0xff]
        %v1395 = vld [vmem:[#allocation11 + $0x80] sm:$0xff]
        %v1396 = vld [vmem:[#allocation11 + $0x88] sm:$0xff]
        %v1397 = vld [vmem:[#allocation11 + $0x90] sm:$0xff]
        %v1398 = vld [vmem:[#allocation11 + $0x98] sm:$0xff]
        %v1399 = vld [vmem:[#allocation11 + $0xa0] sm:$0xff]
        %v1400 = vld [vmem:[#allocation11 + $0xa8] sm:$0xff]
        %v1401 = vld [vmem:[#allocation11 + $0xb0] sm:$0xff]
        %v1402 = vld [vmem:[#allocation11 + $0xb8] sm:$0xff]
        %v1403 = vld [vmem:[#allocation11 + $0xc0] sm:$0xff]
        %v1404 = vld [vmem:[#allocation11 + $0xc8] sm:$0xff]
        %v1405 = vld [vmem:[#allocation11 + $0xd0] sm:$0xff]
        %v1406 = vld [vmem:[#allocation11 + $0xd8] sm:$0xff]
        %v1407 = vld [vmem:[#allocation11 + $0xe0] sm:$0xff]
        %v1408 = vld [vmem:[#allocation11 + $0xe8] sm:$0xff]
        %v1409 = vld [vmem:[#allocation11 + $0xf0] sm:$0xff]
        %v1410 = vld [vmem:[#allocation11 + $0xf8] sm:$0xff]
        %1411 = vmatprep.subr.mxu0 0.0
        %1412 = vmatpush1.msra.mxu0 %v1315
        %1413 = vmatprep.subr.mxu0 0.0
        %1414 = vmatpush1.msra.mxu0 %v1316
        %1415 = vmatprep.subr.mxu0 0.0
        %1416 = vmatpush1.msra.mxu0 %v1317
        %1417 = vmatprep.subr.mxu0 0.0
        %1418 = vmatpush1.msra.mxu0 %v1318
        %1419 = vmatprep.subr.mxu0 0.0
        %1420 = vmatpush1.msra.mxu0 %v1319
        %1421 = vmatprep.subr.mxu0 0.0
        %1422 = vmatpush1.msra.mxu0 %v1320
        %1423 = vmatprep.subr.mxu0 0.0
        %1424 = vmatpush1.msra.mxu0 %v1321
        %1425 = vmatprep.subr.mxu0 0.0
        %1426 = vmatpush1.msra.mxu0 %v1322
        %1427 = vmatprep.subr.mxu0 0.0
        %1428 = vmatpush1.msra.mxu0 %v1323
        %1429 = vmatprep.subr.mxu0 0.0
        %1430 = vmatpush1.msra.mxu0 %v1324
        %1431 = vmatprep.subr.mxu0 0.0
        %1432 = vmatpush1.msra.mxu0 %v1325
        %1433 = vmatprep.subr.mxu0 0.0
        %1434 = vmatpush1.msra.mxu0 %v1326
        %1435 = vmatprep.subr.mxu0 0.0
        %1436 = vmatpush1.msra.mxu0 %v1327
        %1437 = vmatprep.subr.mxu0 0.0
        %1438 = vmatpush1.msra.mxu0 %v1328
        %1439 = vmatprep.subr.mxu0 0.0
        %1440 = vmatpush1.msra.mxu0 %v1329
        %1441 = vmatprep.subr.mxu0 0.0
        %1442 = vmatpush1.msra.mxu0 %v1330
        %1443 = vmatprep.subr.mxu0 0.0
        %1444 = vmatpush1.msra.mxu0 0.0
        %1445 = vmatprep.subr.mxu0 0.0
        %1446 = vmatpush1.msra.mxu0 0.0
        %1447 = vmatprep.subr.mxu0 0.0
        %1448 = vmatpush1.msra.mxu0 0.0
        %1449 = vmatprep.subr.mxu0 0.0
        %1450 = vmatpush1.msra.mxu0 0.0
        %1451 = vmatprep.subr.mxu0 0.0
        %1452 = vmatpush1.msra.mxu0 0.0
        %1453 = vmatprep.subr.mxu0 0.0
        %1454 = vmatpush1.msra.mxu0 0.0
        %1455 = vmatprep.subr.mxu0 0.0
        %1456 = vmatpush1.msra.mxu0 0.0
        %1457 = vmatprep.subr.mxu0 0.0
        %1458 = vmatpush1.msra.mxu0 0.0
        %1459 = vmatprep.subr.mxu0 0.0
        %1460 = vmatpush1.msra.mxu0 0.0
        %1461 = vmatprep.subr.mxu0 0.0
        %1462 = vmatpush1.msra.mxu0 0.0
        %1463 = vmatprep.subr.mxu0 0.0
        %1464 = vmatpush1.msra.mxu0 0.0
        %1465 = vmatprep.subr.mxu0 0.0
        %1466 = vmatpush1.msra.mxu0 0.0
        %1467 = vmatprep.subr.mxu0 0.0
        %1468 = vmatpush1.msra.mxu0 0.0
        %1469 = vmatprep.subr.mxu0 0.0
        %1470 = vmatpush1.msra.mxu0 0.0
        %1471 = vmatprep.subr.mxu0 0.0
        %1472 = vmatpush1.msra.mxu0 0.0
        %1473 = vmatprep.subr.mxu0 0.0
        %1474 = vmatpush1.msra.mxu0 0.0
        %1475 = vmatprep.mubr.f32.mxu0 0.0
        %1476 = vmatmul.mubr.f32.gmra.mrb[0].mxu0 %v1379
        %v1477 = vpop.f32.mrb[0].mxu0
        %v1478 = vadd.f32 0.0, %v1477
        %v1479 = vpop.f32.mrb[0].mxu0
        %1480 = vmatprep.mubr.f32.mxu0 0.0
        %1481 = vmatmul.mubr.f32.gmra.mrb[0].mxu0 %v1380
        %v1482 = vpop.f32.mrb[0].mxu0
        %v1483 = vadd.f32 0.0, %v1482
        %v1484 = vpop.f32.mrb[0].mxu0
        %1485 = vmatprep.mubr.f32.mxu0 0.0
        %1486 = vmatmul.mubr.f32.gmra.mrb[0].mxu0 %v1381
        %v1487 = vpop.f32.mrb[0].mxu0
        %v1488 = vadd.f32 0.0, %v1487
        %v1489 = vpop.f32.mrb[0].mxu0
        %1490 = vmatprep.mubr.f32.mxu0 0.0
        %1491 = vmatmul.mubr.f32.gmra.mrb[0].mxu0 %v1382
        %v1492 = vpop.f32.mrb[0].mxu0
        %v1493 = vadd.f32 0.0, %v1492
        %v1494 = vpop.f32.mrb[0].mxu0
        %1495 = vmatprep.mubr.f32.mxu0 0.0
        %1496 = vmatmul.mubr.f32.gmra.mrb[0].mxu0 %v1383
        %v1497 = vpop.f32.mrb[0].mxu0
        %v1498 = vadd.f32 0.0, %v1497
        %v1499 = vpop.f32.mrb[0].mxu0
        %1500 = vmatprep.mubr.f32.mxu0 0.0
        %1501 = vmatmul.mubr.f32.gmra.mrb[0].mxu0 %v1384
        %v1502 = vpop.f32.mrb[0].mxu0
        %v1503 = vadd.f32 0.0, %v1502
        %v1504 = vpop.f32.mrb[0].mxu0
        %1505 = vmatprep.mubr.f32.mxu0 0.0
        %1506 = vmatmul.mubr.f32.gmra.mrb[0].mxu0 %v1385
        %v1507 = vpop.f32.mrb[0].mxu0
        %v1508 = vadd.f32 0.0, %v1507
        %v1509 = vpop.f32.mrb[0].mxu0
        %1510 = vmatprep.mubr.f32.mxu0 0.0
        %1511 = vmatmul.mubr.f32.gmra.mrb[0].mxu0 %v1386
        %v1512 = vpop.f32.mrb[0].mxu0
        %v1513 = vadd.f32 0.0, %v1512
        %v1514 = vpop.f32.mrb[0].mxu0
        %1515 = vmatprep.mubr.f32.mxu0 0.0
        %1516 = vmatmul.mubr.f32.gmra.mrb[0].mxu0 %v1387
        %v1517 = vpop.f32.mrb[0].mxu0
        %v1518 = vadd.f32 0.0, %v1517
        %v1519 = vpop.f32.mrb[0].mxu0
        %1520 = vmatprep.mubr.f32.mxu0 0.0
        %1521 = vmatmul.mubr.f32.gmra.mrb[0].mxu0 %v1388
        %v1522 = vpop.f32.mrb[0].mxu0
        %v1523 = vadd.f32 0.0, %v1522
        %v1524 = vpop.f32.mrb[0].mxu0
        %1525 = vmatprep.mubr.f32.mxu0 0.0
        %1526 = vmatmul.mubr.f32.gmra.mrb[0].mxu0 %v1389
        %v1527 = vpop.f32.mrb[0].mxu0
        %v1528 = vadd.f32 0.0, %v1527
        %v1529 = vpop.f32.mrb[0].mxu0
        %1530 = vmatprep.mubr.f32.mxu0 0.0
        %1531 = vmatmul.mubr.f32.gmra.mrb[0].mxu0 %v1390
        %v1532 = vpop.f32.mrb[0].mxu0
        %v1533 = vadd.f32 0.0, %v1532
        %v1534 = vpop.f32.mrb[0].mxu0
        %1535 = vmatprep.mubr.f32.mxu0 0.0
        %1536 = vmatmul.mubr.f32.gmra.mrb[0].mxu0 %v1391
        %v1537 = vpop.f32.mrb[0].mxu0
        %v1538 = vadd.f32 0.0, %v1537
        %v1539 = vpop.f32.mrb[0].mxu0
        %1540 = vmatprep.mubr.f32.mxu0 0.0
        %1541 = vmatmul.mubr.f32.gmra.mrb[0].mxu0 %v1392
        %v1542 = vpop.f32.mrb[0].mxu0
        %v1543 = vadd.f32 0.0, %v1542
        %v1544 = vpop.f32.mrb[0].mxu0
        %1545 = vmatprep.mubr.f32.mxu0 0.0
        %1546 = vmatmul.mubr.f32.gmra.mrb[0].mxu0 %v1393
        %v1547 = vpop.f32.mrb[0].mxu0
        %v1548 = vadd.f32 0.0, %v1547
        %v1549 = vpop.f32.mrb[0].mxu0
        %1550 = vmatprep.mubr.f32.mxu0 0.0
        %1551 = vmatmul.mubr.f32.gmra.mrb[0].mxu0 %v1394
        %v1552 = vpop.f32.mrb[0].mxu0
        %v1553 = vadd.f32 0.0, %v1552
        %v1554 = vpop.f32.mrb[0].mxu0
        %1555 = vmatprep.mubr.f32.mxu0 0.0
        %1556 = vmatmul.mubr.f32.gmra.mrb[0].mxu0 %v1395
        %v1557 = vpop.f32.mrb[0].mxu0
        %v1558 = vadd.f32 0.0, %v1557
        %v1559 = vpop.f32.mrb[0].mxu0
        %1560 = vmatprep.mubr.f32.mxu0 0.0
        %1561 = vmatmul.mubr.f32.gmra.mrb[0].mxu0 %v1396
        %v1562 = vpop.f32.mrb[0].mxu0
        %v1563 = vadd.f32 0.0, %v1562
        %v1564 = vpop.f32.mrb[0].mxu0
        %1565 = vmatprep.mubr.f32.mxu0 0.0
        %1566 = vmatmul.mubr.f32.gmra.mrb[0].mxu0 %v1397
        %v1567 = vpop.f32.mrb[0].mxu0
        %v1568 = vadd.f32 0.0, %v1567
        %v1569 = vpop.f32.mrb[0].mxu0
        %1570 = vmatprep.mubr.f32.mxu0 0.0
        %1571 = vmatmul.mubr.f32.gmra.mrb[0].mxu0 %v1398
        %v1572 = vpop.f32.mrb[0].mxu0
        %v1573 = vadd.f32 0.0, %v1572
        %v1574 = vpop.f32.mrb[0].mxu0
        %1575 = vmatprep.mubr.f32.mxu0 0.0
        %1576 = vmatmul.mubr.f32.gmra.mrb[0].mxu0 %v1399
        %v1577 = vpop.f32.mrb[0].mxu0
        %v1578 = vadd.f32 0.0, %v1577
        %v1579 = vpop.f32.mrb[0].mxu0
        %1580 = vmatprep.mubr.f32.mxu0 0.0
        %1581 = vmatmul.mubr.f32.gmra.mrb[0].mxu0 %v1400
        %v1582 = vpop.f32.mrb[0].mxu0
        %v1583 = vadd.f32 0.0, %v1582
        %v1584 = vpop.f32.mrb[0].mxu0
        %1585 = vmatprep.mubr.f32.mxu0 0.0
        %1586 = vmatmul.mubr.f32.gmra.mrb[0].mxu0 %v1401
        %v1587 = vpop.f32.mrb[0].mxu0
        %v1588 = vadd.f32 0.0, %v1587
        %v1589 = vpop.f32.mrb[0].mxu0
        %1590 = vmatprep.mubr.f32.mxu0 0.0
        %1591 = vmatmul.mubr.f32.gmra.mrb[0].mxu0 %v1402
        %v1592 = vpop.f32.mrb[0].mxu0
        %v1593 = vadd.f32 0.0, %v1592
        %v1594 = vpop.f32.mrb[0].mxu0
        %1595 = vmatprep.mubr.f32.mxu0 0.0
        %1596 = vmatmul.mubr.f32.gmra.mrb[0].mxu0 %v1403
        %v1597 = vpop.f32.mrb[0].mxu0
        %v1598 = vadd.f32 0.0, %v1597
        %v1599 = vpop.f32.mrb[0].mxu0
        %1600 = vmatprep.mubr.f32.mxu0 0.0
        %1601 = vmatmul.mubr.f32.gmra.mrb[0].mxu0 %v1404
        %v1602 = vpop.f32.mrb[0].mxu0
        %v1603 = vadd.f32 0.0, %v1602
        %v1604 = vpop.f32.mrb[0].mxu0
        %1605 = vmatprep.mubr.f32.mxu0 0.0
        %1606 = vmatmul.mubr.f32.gmra.mrb[0].mxu0 %v1405
        %v1607 = vpop.f32.mrb[0].mxu0
        %v1608 = vadd.f32 0.0, %v1607
        %v1609 = vpop.f32.mrb[0].mxu0
        %1610 = vmatprep.mubr.f32.mxu0 0.0
        %1611 = vmatmul.mubr.f32.gmra.mrb[0].mxu0 %v1406
        %v1612 = vpop.f32.mrb[0].mxu0
        %v1613 = vadd.f32 0.0, %v1612
        %v1614 = vpop.f32.mrb[0].mxu0
        %1615 = vmatprep.mubr.f32.mxu0 0.0
        %1616 = vmatmul.mubr.f32.gmra.mrb[0].mxu0 %v1407
        %v1617 = vpop.f32.mrb[0].mxu0
        %v1618 = vadd.f32 0.0, %v1617
        %v1619 = vpop.f32.mrb[0].mxu0
        %1620 = vmatprep.mubr.f32.mxu0 0.0
        %1621 = vmatmul.mubr.f32.gmra.mrb[0].mxu0 %v1408
        %v1622 = vpop.f32.mrb[0].mxu0
        %v1623 = vadd.f32 0.0, %v1622
        %v1624 = vpop.f32.mrb[0].mxu0
        %1625 = vmatprep.mubr.f32.mxu0 0.0
        %1626 = vmatmul.mubr.f32.gmra.mrb[0].mxu0 %v1409
        %v1627 = vpop.f32.mrb[0].mxu0
        %v1628 = vadd.f32 0.0, %v1627
        %v1629 = vpop.f32.mrb[0].mxu0
        %1630 = vmatprep.mubr.f32.mxu0 0.0
        %1631 = vmatmul.mubr.f32.gmra.mrb[0].mxu0 %v1410
        %v1632 = vpop.f32.mrb[0].mxu0
        %v1633 = vadd.f32 0.0, %v1632
        %v1634 = vpop.f32.mrb[0].mxu0
        %1635 = vdwg.mxu0
        %1636 = vmatprep.subr.mxu0 0.0
        %1637 = vmatpush1.msra.mxu0 %v1363
        %1638 = vmatprep.subr.mxu0 0.0
        %1639 = vmatpush1.msra.mxu0 %v1364
        %1640 = vmatprep.subr.mxu0 0.0
        %1641 = vmatpush1.msra.mxu0 %v1365
        %1642 = vmatprep.subr.mxu0 0.0
        %1643 = vmatpush1.msra.mxu0 %v1366
        %1644 = vmatprep.subr.mxu0 0.0
        %1645 = vmatpush1.msra.mxu0 %v1367
        %1646 = vmatprep.subr.mxu0 0.0
        %1647 = vmatpush1.msra.mxu0 %v1368
        %1648 = vmatprep.subr.mxu0 0.0
        %1649 = vmatpush1.msra.mxu0 %v1369
        %1650 = vmatprep.subr.mxu0 0.0
        %1651 = vmatpush1.msra.mxu0 %v1370
        %1652 = vmatprep.subr.mxu0 0.0
        %1653 = vmatpush1.msra.mxu0 %v1371
        %1654 = vmatprep.subr.mxu0 0.0
        %1655 = vmatpush1.msra.mxu0 %v1372
        %1656 = vmatprep.subr.mxu0 0.0
        %1657 = vmatpush1.msra.mxu0 %v1373
        %1658 = vmatprep.subr.mxu0 0.0
        %1659 = vmatpush1.msra.mxu0 %v1374
        %1660 = vmatprep.subr.mxu0 0.0
        %1661 = vmatpush1.msra.mxu0 %v1375
        %1662 = vmatprep.subr.mxu0 0.0
        %1663 = vmatpush1.msra.mxu0 %v1376
        %1664 = vmatprep.subr.mxu0 0.0
        %1665 = vmatpush1.msra.mxu0 %v1377
        %1666 = vmatprep.subr.mxu0 0.0
        %1667 = vmatpush1.msra.mxu0 %v1378
        %1668 = vmatprep.subr.mxu0 0.0
        %1669 = vmatpush1.msra.mxu0 0.0
        %1670 = vmatprep.subr.mxu0 0.0
        %1671 = vmatpush1.msra.mxu0 0.0
        %1672 = vmatprep.subr.mxu0 0.0
        %1673 = vmatpush1.msra.mxu0 0.0
        %1674 = vmatprep.subr.mxu0 0.0
        %1675 = vmatpush1.msra.mxu0 0.0
        %1676 = vmatprep.subr.mxu0 0.0
        %1677 = vmatpush1.msra.mxu0 0.0
        %1678 = vmatprep.subr.mxu0 0.0
        %1679 = vmatpush1.msra.mxu0 0.0
        %1680 = vmatprep.subr.mxu0 0.0
        %1681 = vmatpush1.msra.mxu0 0.0
        %1682 = vmatprep.subr.mxu0 0.0
        %1683 = vmatpush1.msra.mxu0 0.0
        %1684 = vmatprep.subr.mxu0 0.0
        %1685 = vmatpush1.msra.mxu0 0.0
        %1686 = vmatprep.subr.mxu0 0.0
        %1687 = vmatpush1.msra.mxu0 0.0
        %1688 = vmatprep.subr.mxu0 0.0
        %1689 = vmatpush1.msra.mxu0 0.0
        %1690 = vmatprep.subr.mxu0 0.0
        %1691 = vmatpush1.msra.mxu0 0.0
        %1692 = vmatprep.subr.mxu0 0.0
        %1693 = vmatpush1.msra.mxu0 0.0
        %1694 = vmatprep.subr.mxu0 0.0
        %1695 = vmatpush1.msra.mxu0 0.0
        %1696 = vmatprep.subr.mxu0 0.0
        %1697 = vmatpush1.msra.mxu0 0.0
        %1698 = vmatprep.subr.mxu0 0.0
        %1699 = vmatpush1.msra.mxu0 0.0
        %1700 = vmatprep.mubr.f32.mxu0 0.0
        %1701 = vmatmul.mubr.f32.gmra.mrb[0].mxu0 %v1379
        %v1702 = vpop.f32.mrb[0].mxu0
        %v1703 = vadd.f32 0.0, %v1702
        %v1704 = vpop.f32.mrb[0].mxu0
        %1705 = vmatprep.mubr.f32.mxu0 0.0
        %1706 = vmatmul.mubr.f32.gmra.mrb[0].mxu0 %v1380
        %v1707 = vpop.f32.mrb[0].mxu0
        %v1708 = vadd.f32 0.0, %v1707
        %v1709 = vpop.f32.mrb[0].mxu0
        %1710 = vmatprep.mubr.f32.mxu0 0.0
        %1711 = vmatmul.mubr.f32.gmra.mrb[0].mxu0 %v1381
        %v1712 = vpop.f32.mrb[0].mxu0
        %v1713 = vadd.f32 0.0, %v1712
        %v1714 = vpop.f32.mrb[0].mxu0
        %1715 = vmatprep.mubr.f32.mxu0 0.0
        %1716 = vmatmul.mubr.f32.gmra.mrb[0].mxu0 %v1382
        %v1717 = vpop.f32.mrb[0].mxu0
        %v1718 = vadd.f32 0.0, %v1717
        %v1719 = vpop.f32.mrb[0].mxu0
        %1720 = vmatprep.mubr.f32.mxu0 0.0
        %1721 = vmatmul.mubr.f32.gmra.mrb[0].mxu0 %v1383
        %v1722 = vpop.f32.mrb[0].mxu0
        %v1723 = vadd.f32 0.0, %v1722
        %v1724 = vpop.f32.mrb[0].mxu0
        %1725 = vmatprep.mubr.f32.mxu0 0.0
        %1726 = vmatmul.mubr.f32.gmra.mrb[0].mxu0 %v1384
        %v1727 = vpop.f32.mrb[0].mxu0
        %v1728 = vadd.f32 0.0, %v1727
        %v1729 = vpop.f32.mrb[0].mxu0
        %1730 = vmatprep.mubr.f32.mxu0 0.0
        %1731 = vmatmul.mubr.f32.gmra.mrb[0].mxu0 %v1385
        %v1732 = vpop.f32.mrb[0].mxu0
        %v1733 = vadd.f32 0.0, %v1732
        %v1734 = vpop.f32.mrb[0].mxu0
        %1735 = vmatprep.mubr.f32.mxu0 0.0
        %1736 = vmatmul.mubr.f32.gmra.mrb[0].mxu0 %v1386
        %v1737 = vpop.f32.mrb[0].mxu0
        %v1738 = vadd.f32 0.0, %v1737
        %v1739 = vpop.f32.mrb[0].mxu0
        %1740 = vmatprep.mubr.f32.mxu0 0.0
        %1741 = vmatmul.mubr.f32.gmra.mrb[0].mxu0 %v1387
        %v1742 = vpop.f32.mrb[0].mxu0
        %v1743 = vadd.f32 0.0, %v1742
        %v1744 = vpop.f32.mrb[0].mxu0
        %1745 = vmatprep.mubr.f32.mxu0 0.0
        %1746 = vmatmul.mubr.f32.gmra.mrb[0].mxu0 %v1388
        %v1747 = vpop.f32.mrb[0].mxu0
        %v1748 = vadd.f32 0.0, %v1747
        %v1749 = vpop.f32.mrb[0].mxu0
        %1750 = vmatprep.mubr.f32.mxu0 0.0
        %1751 = vmatmul.mubr.f32.gmra.mrb[0].mxu0 %v1389
        %v1752 = vpop.f32.mrb[0].mxu0
        %v1753 = vadd.f32 0.0, %v1752
        %v1754 = vpop.f32.mrb[0].mxu0
        %1755 = vmatprep.mubr.f32.mxu0 0.0
        %1756 = vmatmul.mubr.f32.gmra.mrb[0].mxu0 %v1390
        %v1757 = vpop.f32.mrb[0].mxu0
        %v1758 = vadd.f32 0.0, %v1757
        %v1759 = vpop.f32.mrb[0].mxu0
        %1760 = vmatprep.mubr.f32.mxu0 0.0
        %1761 = vmatmul.mubr.f32.gmra.mrb[0].mxu0 %v1391
        %v1762 = vpop.f32.mrb[0].mxu0
        %v1763 = vadd.f32 0.0, %v1762
        %v1764 = vpop.f32.mrb[0].mxu0
        %1765 = vmatprep.mubr.f32.mxu0 0.0
        %1766 = vmatmul.mubr.f32.gmra.mrb[0].mxu0 %v1392
        %v1767 = vpop.f32.mrb[0].mxu0
        %v1768 = vadd.f32 0.0, %v1767
        %v1769 = vpop.f32.mrb[0].mxu0
        %1770 = vmatprep.mubr.f32.mxu0 0.0
        %1771 = vmatmul.mubr.f32.gmra.mrb[0].mxu0 %v1393
        %v1772 = vpop.f32.mrb[0].mxu0
        %v1773 = vadd.f32 0.0, %v1772
        %v1774 = vpop.f32.mrb[0].mxu0
        %1775 = vmatprep.mubr.f32.mxu0 0.0
        %1776 = vmatmul.mubr.f32.gmra.mrb[0].mxu0 %v1394
        %v1777 = vpop.f32.mrb[0].mxu0
        %v1778 = vadd.f32 0.0, %v1777
        %v1779 = vpop.f32.mrb[0].mxu0
        %1780 = vmatprep.mubr.f32.mxu0 0.0
        %1781 = vmatmul.mubr.f32.gmra.mrb[0].mxu0 %v1395
        %v1782 = vpop.f32.mrb[0].mxu0
        %v1783 = vadd.f32 0.0, %v1782
        %v1784 = vpop.f32.mrb[0].mxu0
        %1785 = vmatprep.mubr.f32.mxu0 0.0
        %1786 = vmatmul.mubr.f32.gmra.mrb[0].mxu0 %v1396
        %v1787 = vpop.f32.mrb[0].mxu0
        %v1788 = vadd.f32 0.0, %v1787
        %v1789 = vpop.f32.mrb[0].mxu0
        %1790 = vmatprep.mubr.f32.mxu0 0.0
        %1791 = vmatmul.mubr.f32.gmra.mrb[0].mxu0 %v1397
        %v1792 = vpop.f32.mrb[0].mxu0
        %v1793 = vadd.f32 0.0, %v1792
        %v1794 = vpop.f32.mrb[0].mxu0
        %1795 = vmatprep.mubr.f32.mxu0 0.0
        %1796 = vmatmul.mubr.f32.gmra.mrb[0].mxu0 %v1398
        %v1797 = vpop.f32.mrb[0].mxu0
        %v1798 = vadd.f32 0.0, %v1797
        %v1799 = vpop.f32.mrb[0].mxu0
        %1800 = vmatprep.mubr.f32.mxu0 0.0
        %1801 = vmatmul.mubr.f32.gmra.mrb[0].mxu0 %v1399
        %v1802 = vpop.f32.mrb[0].mxu0
        %v1803 = vadd.f32 0.0, %v1802
        %v1804 = vpop.f32.mrb[0].mxu0
        %1805 = vmatprep.mubr.f32.mxu0 0.0
        %1806 = vmatmul.mubr.f32.gmra.mrb[0].mxu0 %v1400
        %v1807 = vpop.f32.mrb[0].mxu0
        %v1808 = vadd.f32 0.0, %v1807
        %v1809 = vpop.f32.mrb[0].mxu0
        %1810 = vmatprep.mubr.f32.mxu0 0.0
        %1811 = vmatmul.mubr.f32.gmra.mrb[0].mxu0 %v1401
        %v1812 = vpop.f32.mrb[0].mxu0
        %v1813 = vadd.f32 0.0, %v1812
        %v1814 = vpop.f32.mrb[0].mxu0
        %1815 = vmatprep.mubr.f32.mxu0 0.0
        %1816 = vmatmul.mubr.f32.gmra.mrb[0].mxu0 %v1402
        %v1817 = vpop.f32.mrb[0].mxu0
        %v1818 = vadd.f32 0.0, %v1817
        %v1819 = vpop.f32.mrb[0].mxu0
        %1820 = vmatprep.mubr.f32.mxu0 0.0
        %1821 = vmatmul.mubr.f32.gmra.mrb[0].mxu0 %v1403
        %v1822 = vpop.f32.mrb[0].mxu0
        %v1823 = vadd.f32 0.0, %v1822
        %v1824 = vpop.f32.mrb[0].mxu0
        %1825 = vmatprep.mubr.f32.mxu0 0.0
        %1826 = vmatmul.mubr.f32.gmra.mrb[0].mxu0 %v1404
        %v1827 = vpop.f32.mrb[0].mxu0
        %v1828 = vadd.f32 0.0, %v1827
        %v1829 = vpop.f32.mrb[0].mxu0
        %1830 = vmatprep.mubr.f32.mxu0 0.0
        %1831 = vmatmul.mubr.f32.gmra.mrb[0].mxu0 %v1405
        %v1832 = vpop.f32.mrb[0].mxu0
        %v1833 = vadd.f32 0.0, %v1832
        %v1834 = vpop.f32.mrb[0].mxu0
        %1835 = vmatprep.mubr.f32.mxu0 0.0
        %1836 = vmatmul.mubr.f32.gmra.mrb[0].mxu0 %v1406
        %v1837 = vpop.f32.mrb[0].mxu0
        %v1838 = vadd.f32 0.0, %v1837
        %v1839 = vpop.f32.mrb[0].mxu0
        %1840 = vmatprep.mubr.f32.mxu0 0.0
        %1841 = vmatmul.mubr.f32.gmra.mrb[0].mxu0 %v1407
        %v1842 = vpop.f32.mrb[0].mxu0
        %v1843 = vadd.f32 0.0, %v1842
        %v1844 = vpop.f32.mrb[0].mxu0
        %1845 = vmatprep.mubr.f32.mxu0 0.0
        %1846 = vmatmul.mubr.f32.gmra.mrb[0].mxu0 %v1408
        %v1847 = vpop.f32.mrb[0].mxu0
        %v1848 = vadd.f32 0.0, %v1847
        %v1849 = vpop.f32.mrb[0].mxu0
        %1850 = vmatprep.mubr.f32.mxu0 0.0
        %1851 = vmatmul.mubr.f32.gmra.mrb[0].mxu0 %v1409
        %v1852 = vpop.f32.mrb[0].mxu0
        %v1853 = vadd.f32 0.0, %v1852
        %v1854 = vpop.f32.mrb[0].mxu0
        %1855 = vmatprep.mubr.f32.mxu0 0.0
        %1856 = vmatmul.mubr.f32.gmra.mrb[0].mxu0 %v1410
        %v1857 = vpop.f32.mrb[0].mxu0
        %v1858 = vadd.f32 0.0, %v1857
        %v1859 = vpop.f32.mrb[0].mxu0
        %1860 = vdwg.mxu0
        %v1861 = vsub.f32 %v1478, %v1783
        %v1862 = vsub.f32 %v1483, %v1788
        %v1863 = vsub.f32 %v1488, %v1793
        %v1864 = vsub.f32 %v1493, %v1798
        %v1865 = vsub.f32 %v1498, %v1803
        %v1866 = vsub.f32 %v1503, %v1808
        %v1867 = vsub.f32 %v1508, %v1813
        %v1868 = vsub.f32 %v1513, %v1818
        %v1869 = vsub.f32 %v1518, %v1823
        %v1870 = vsub.f32 %v1523, %v1828
        %v1871 = vsub.f32 %v1528, %v1833
        %v1872 = vsub.f32 %v1533, %v1838
        %v1873 = vsub.f32 %v1538, %v1843
        %v1874 = vsub.f32 %v1543, %v1848
        %v1875 = vsub.f32 %v1548, %v1853
        %v1876 = vsub.f32 %v1553, %v1858
        %v1877 = vadd.f32 %v1703, %v1558
        %v1878 = vadd.f32 %v1708, %v1563
        %v1879 = vadd.f32 %v1713, %v1568
        %v1880 = vadd.f32 %v1718, %v1573
        %v1881 = vadd.f32 %v1723, %v1578
        %v1882 = vadd.f32 %v1728, %v1583
        %v1883 = vadd.f32 %v1733, %v1588
        %v1884 = vadd.f32 %v1738, %v1593
        %v1885 = vadd.f32 %v1743, %v1598
        %v1886 = vadd.f32 %v1748, %v1603
        %v1887 = vadd.f32 %v1753, %v1608
        %v1888 = vadd.f32 %v1758, %v1613
        %v1889 = vadd.f32 %v1763, %v1618
        %v1890 = vadd.f32 %v1768, %v1623
        %v1891 = vadd.f32 %v1773, %v1628
        %v1892 = vadd.f32 %v1778, %v1633
        %v1893 = vld [vmem:[#allocation13] sm:$0xff]
        %v1894 = vld [vmem:[#allocation13 + $0x8] sm:$0xff]
        %v1895 = vld [vmem:[#allocation13 + $0x10] sm:$0xff]
        %v1896 = vld [vmem:[#allocation13 + $0x18] sm:$0xff]
        %v1897 = vld [vmem:[#allocation13 + $0x20] sm:$0xff]
        %v1898 = vld [vmem:[#allocation13 + $0x28] sm:$0xff]
        %v1899 = vld [vmem:[#allocation13 + $0x30] sm:$0xff]
        %v1900 = vld [vmem:[#allocation13 + $0x38] sm:$0xff]
        %v1901 = vld [vmem:[#allocation13 + $0x40] sm:$0xff]
        %v1902 = vld [vmem:[#allocation13 + $0x48] sm:$0xff]
        %v1903 = vld [vmem:[#allocation13 + $0x50] sm:$0xff]
        %v1904 = vld [vmem:[#allocation13 + $0x58] sm:$0xff]
        %v1905 = vld [vmem:[#allocation13 + $0x60] sm:$0xff]
        %v1906 = vld [vmem:[#allocation13 + $0x68] sm:$0xff]
        %v1907 = vld [vmem:[#allocation13 + $0x70] sm:$0xff]
        %v1908 = vld [vmem:[#allocation13 + $0x78] sm:$0xff]
        %v1909 = vld [vmem:[#allocation13 + $0x80] sm:$0xff]
        %v1910 = vld [vmem:[#allocation13 + $0x88] sm:$0xff]
        %v1911 = vld [vmem:[#allocation13 + $0x90] sm:$0xff]
        %v1912 = vld [vmem:[#allocation13 + $0x98] sm:$0xff]
        %v1913 = vld [vmem:[#allocation13 + $0xa0] sm:$0xff]
        %v1914 = vld [vmem:[#allocation13 + $0xa8] sm:$0xff]
        %v1915 = vld [vmem:[#allocation13 + $0xb0] sm:$0xff]
        %v1916 = vld [vmem:[#allocation13 + $0xb8] sm:$0xff]
        %v1917 = vld [vmem:[#allocation13 + $0xc0] sm:$0xff]
        %v1918 = vld [vmem:[#allocation13 + $0xc8] sm:$0xff]
        %v1919 = vld [vmem:[#allocation13 + $0xd0] sm:$0xff]
        %v1920 = vld [vmem:[#allocation13 + $0xd8] sm:$0xff]
        %v1921 = vld [vmem:[#allocation13 + $0xe0] sm:$0xff]
        %v1922 = vld [vmem:[#allocation13 + $0xe8] sm:$0xff]
        %v1923 = vld [vmem:[#allocation13 + $0xf0] sm:$0xff]
        %v1924 = vld [vmem:[#allocation13 + $0xf8] sm:$0xff]
        %1925 = vmatprep.subr.mxu0 %v1894
        %1926 = vmatpush1.msra.mxu0 %v1893
        %1927 = vmatprep.subr.mxu0 %v1896
        %1928 = vmatpush1.msra.mxu0 %v1895
        %1929 = vmatprep.subr.mxu0 %v1898
        %1930 = vmatpush1.msra.mxu0 %v1897
        %1931 = vmatprep.subr.mxu0 %v1900
        %1932 = vmatpush1.msra.mxu0 %v1899
        %1933 = vmatprep.subr.mxu0 %v1902
        %1934 = vmatpush1.msra.mxu0 %v1901
        %1935 = vmatprep.subr.mxu0 %v1904
        %1936 = vmatpush1.msra.mxu0 %v1903
        %1937 = vmatprep.subr.mxu0 %v1906
        %1938 = vmatpush1.msra.mxu0 %v1905
        %1939 = vmatprep.subr.mxu0 %v1908
        %1940 = vmatpush1.msra.mxu0 %v1907
        %1941 = vmatprep.subr.mxu0 %v1910
        %1942 = vmatpush1.msra.mxu0 %v1909
        %1943 = vmatprep.subr.mxu0 %v1912
        %1944 = vmatpush1.msra.mxu0 %v1911
        %1945 = vmatprep.subr.mxu0 %v1914
        %1946 = vmatpush1.msra.mxu0 %v1913
        %1947 = vmatprep.subr.mxu0 %v1916
        %1948 = vmatpush1.msra.mxu0 %v1915
        %1949 = vmatprep.subr.mxu0 %v1918
        %1950 = vmatpush1.msra.mxu0 %v1917
        %1951 = vmatprep.subr.mxu0 %v1920
        %1952 = vmatpush1.msra.mxu0 %v1919
        %1953 = vmatprep.subr.mxu0 %v1922
        %1954 = vmatpush1.msra.mxu0 %v1921
        %1955 = vmatprep.subr.mxu0 %v1924
        %1956 = vmatpush1.msra.mxu0 %v1923
        %1957 = vmatprep.subr.mxu0 0.0
        %1958 = vmatpush1.msra.mxu0 0.0
        %1959 = vmatprep.subr.mxu0 0.0
        %1960 = vmatpush1.msra.mxu0 0.0
        %1961 = vmatprep.subr.mxu0 0.0
        %1962 = vmatpush1.msra.mxu0 0.0
        %1963 = vmatprep.subr.mxu0 0.0
        %1964 = vmatpush1.msra.mxu0 0.0
        %1965 = vmatprep.subr.mxu0 0.0
        %1966 = vmatpush1.msra.mxu0 0.0
        %1967 = vmatprep.subr.mxu0 0.0
        %1968 = vmatpush1.msra.mxu0 0.0
        %1969 = vmatprep.subr.mxu0 0.0
        %1970 = vmatpush1.msra.mxu0 0.0
        %1971 = vmatprep.subr.mxu0 0.0
        %1972 = vmatpush1.msra.mxu0 0.0
        %1973 = vmatprep.subr.mxu0 0.0
        %1974 = vmatpush1.msra.mxu0 0.0
        %1975 = vmatprep.subr.mxu0 0.0
        %1976 = vmatpush1.msra.mxu0 0.0
        %1977 = vmatprep.subr.mxu0 0.0
        %1978 = vmatpush1.msra.mxu0 0.0
        %1979 = vmatprep.subr.mxu0 0.0
        %1980 = vmatpush1.msra.mxu0 0.0
        %1981 = vmatprep.subr.mxu0 0.0
        %1982 = vmatpush1.msra.mxu0 0.0
        %1983 = vmatprep.subr.mxu0 0.0
        %1984 = vmatpush1.msra.mxu0 0.0
        %1985 = vmatprep.subr.mxu0 0.0
        %1986 = vmatpush1.msra.mxu0 0.0
        %1987 = vmatprep.subr.mxu0 0.0
        %1988 = vmatpush1.msra.mxu0 0.0
        %1989 = vmatprep.mubr.f32.mxu0 0.0
        %1990 = vmatmul.mubr.f32.gmra.mrb[0].mxu0 %v1861
        %v1991 = vpop.f32.mrb[0].mxu0
        %v1992 = vadd.f32 0.0, %v1991
        %v1993 = vpop.f32.mrb[0].mxu0
        %v1994 = vadd.f32 0.0, %v1993
        %1995 = vmatprep.mubr.f32.mxu0 0.0
        %1996 = vmatmul.mubr.f32.gmra.mrb[0].mxu0 %v1862
        %v1997 = vpop.f32.mrb[0].mxu0
        %v1998 = vadd.f32 0.0, %v1997
        %v1999 = vpop.f32.mrb[0].mxu0
        %v2000 = vadd.f32 0.0, %v1999
        %2001 = vmatprep.mubr.f32.mxu0 0.0
        %2002 = vmatmul.mubr.f32.gmra.mrb[0].mxu0 %v1863
        %v2003 = vpop.f32.mrb[0].mxu0
        %v2004 = vadd.f32 0.0, %v2003
        %v2005 = vpop.f32.mrb[0].mxu0
        %v2006 = vadd.f32 0.0, %v2005
        %2007 = vmatprep.mubr.f32.mxu0 0.0
        %2008 = vmatmul.mubr.f32.gmra.mrb[0].mxu0 %v1864
        %v2009 = vpop.f32.mrb[0].mxu0
        %v2010 = vadd.f32 0.0, %v2009
        %v2011 = vpop.f32.mrb[0].mxu0
        %v2012 = vadd.f32 0.0, %v2011
        %2013 = vmatprep.mubr.f32.mxu0 0.0
        %2014 = vmatmul.mubr.f32.gmra.mrb[0].mxu0 %v1865
        %v2015 = vpop.f32.mrb[0].mxu0
        %v2016 = vadd.f32 0.0, %v2015
        %v2017 = vpop.f32.mrb[0].mxu0
        %v2018 = vadd.f32 0.0, %v2017
        %2019 = vmatprep.mubr.f32.mxu0 0.0
        %2020 = vmatmul.mubr.f32.gmra.mrb[0].mxu0 %v1866
        %v2021 = vpop.f32.mrb[0].mxu0
        %v2022 = vadd.f32 0.0, %v2021
        %v2023 = vpop.f32.mrb[0].mxu0
        %v2024 = vadd.f32 0.0, %v2023
        %2025 = vmatprep.mubr.f32.mxu0 0.0
        %2026 = vmatmul.mubr.f32.gmra.mrb[0].mxu0 %v1867
        %v2027 = vpop.f32.mrb[0].mxu0
        %v2028 = vadd.f32 0.0, %v2027
        %v2029 = vpop.f32.mrb[0].mxu0
        %v2030 = vadd.f32 0.0, %v2029
        %2031 = vmatprep.mubr.f32.mxu0 0.0
        %2032 = vmatmul.mubr.f32.gmra.mrb[0].mxu0 %v1868
        %v2033 = vpop.f32.mrb[0].mxu0
        %v2034 = vadd.f32 0.0, %v2033
        %v2035 = vpop.f32.mrb[0].mxu0
        %v2036 = vadd.f32 0.0, %v2035
        %2037 = vmatprep.mubr.f32.mxu0 0.0
        %2038 = vmatmul.mubr.f32.gmra.mrb[0].mxu0 %v1869
        %v2039 = vpop.f32.mrb[0].mxu0
        %v2040 = vadd.f32 0.0, %v2039
        %v2041 = vpop.f32.mrb[0].mxu0
        %v2042 = vadd.f32 0.0, %v2041
        %2043 = vmatprep.mubr.f32.mxu0 0.0
        %2044 = vmatmul.mubr.f32.gmra.mrb[0].mxu0 %v1870
        %v2045 = vpop.f32.mrb[0].mxu0
        %v2046 = vadd.f32 0.0, %v2045
        %v2047 = vpop.f32.mrb[0].mxu0
        %v2048 = vadd.f32 0.0, %v2047
        %2049 = vmatprep.mubr.f32.mxu0 0.0
        %2050 = vmatmul.mubr.f32.gmra.mrb[0].mxu0 %v1871
        %v2051 = vpop.f32.mrb[0].mxu0
        %v2052 = vadd.f32 0.0, %v2051
        %v2053 = vpop.f32.mrb[0].mxu0
        %v2054 = vadd.f32 0.0, %v2053
        %2055 = vmatprep.mubr.f32.mxu0 0.0
        %2056 = vmatmul.mubr.f32.gmra.mrb[0].mxu0 %v1872
        %v2057 = vpop.f32.mrb[0].mxu0
        %v2058 = vadd.f32 0.0, %v2057
        %v2059 = vpop.f32.mrb[0].mxu0
        %v2060 = vadd.f32 0.0, %v2059
        %2061 = vmatprep.mubr.f32.mxu0 0.0
        %2062 = vmatmul.mubr.f32.gmra.mrb[0].mxu0 %v1873
        %v2063 = vpop.f32.mrb[0].mxu0
        %v2064 = vadd.f32 0.0, %v2063
        %v2065 = vpop.f32.mrb[0].mxu0
        %v2066 = vadd.f32 0.0, %v2065
        %2067 = vmatprep.mubr.f32.mxu0 0.0
        %2068 = vmatmul.mubr.f32.gmra.mrb[0].mxu0 %v1874
        %v2069 = vpop.f32.mrb[0].mxu0
        %v2070 = vadd.f32 0.0, %v2069
        %v2071 = vpop.f32.mrb[0].mxu0
        %v2072 = vadd.f32 0.0, %v2071
        %2073 = vmatprep.mubr.f32.mxu0 0.0
        %2074 = vmatmul.mubr.f32.gmra.mrb[0].mxu0 %v1875
        %v2075 = vpop.f32.mrb[0].mxu0
        %v2076 = vadd.f32 0.0, %v2075
        %v2077 = vpop.f32.mrb[0].mxu0
        %v2078 = vadd.f32 0.0, %v2077
        %2079 = vmatprep.mubr.f32.mxu0 0.0
        %2080 = vmatmul.mubr.f32.gmra.mrb[0].mxu0 %v1876
        %v2081 = vpop.f32.mrb[0].mxu0
        %v2082 = vadd.f32 0.0, %v2081
        %v2083 = vpop.f32.mrb[0].mxu0
        %v2084 = vadd.f32 0.0, %v2083
        %2085 = vdwg.mxu0
        %2086 = vmatprep.subr.mxu0 %v1894
        %2087 = vmatpush1.msra.mxu0 %v1893
        %2088 = vmatprep.subr.mxu0 %v1896
        %2089 = vmatpush1.msra.mxu0 %v1895
        %2090 = vmatprep.subr.mxu0 %v1898
        %2091 = vmatpush1.msra.mxu0 %v1897
        %2092 = vmatprep.subr.mxu0 %v1900
        %2093 = vmatpush1.msra.mxu0 %v1899
        %2094 = vmatprep.subr.mxu0 %v1902
        %2095 = vmatpush1.msra.mxu0 %v1901
        %2096 = vmatprep.subr.mxu0 %v1904
        %2097 = vmatpush1.msra.mxu0 %v1903
        %2098 = vmatprep.subr.mxu0 %v1906
        %2099 = vmatpush1.msra.mxu0 %v1905
        %2100 = vmatprep.subr.mxu0 %v1908
        %2101 = vmatpush1.msra.mxu0 %v1907
        %2102 = vmatprep.subr.mxu0 %v1910
        %2103 = vmatpush1.msra.mxu0 %v1909
        %2104 = vmatprep.subr.mxu0 %v1912
        %2105 = vmatpush1.msra.mxu0 %v1911
        %2106 = vmatprep.subr.mxu0 %v1914
        %2107 = vmatpush1.msra.mxu0 %v1913
        %2108 = vmatprep.subr.mxu0 %v1916
        %2109 = vmatpush1.msra.mxu0 %v1915
        %2110 = vmatprep.subr.mxu0 %v1918
        %2111 = vmatpush1.msra.mxu0 %v1917
        %2112 = vmatprep.subr.mxu0 %v1920
        %2113 = vmatpush1.msra.mxu0 %v1919
        %2114 = vmatprep.subr.mxu0 %v1922
        %2115 = vmatpush1.msra.mxu0 %v1921
        %2116 = vmatprep.subr.mxu0 %v1924
        %2117 = vmatpush1.msra.mxu0 %v1923
        %2118 = vmatprep.subr.mxu0 0.0
        %2119 = vmatpush1.msra.mxu0 0.0
        %2120 = vmatprep.subr.mxu0 0.0
        %2121 = vmatpush1.msra.mxu0 0.0
        %2122 = vmatprep.subr.mxu0 0.0
        %2123 = vmatpush1.msra.mxu0 0.0
        %2124 = vmatprep.subr.mxu0 0.0
        %2125 = vmatpush1.msra.mxu0 0.0
        %2126 = vmatprep.subr.mxu0 0.0
        %2127 = vmatpush1.msra.mxu0 0.0
        %2128 = vmatprep.subr.mxu0 0.0
        %2129 = vmatpush1.msra.mxu0 0.0
        %2130 = vmatprep.subr.mxu0 0.0
        %2131 = vmatpush1.msra.mxu0 0.0
        %2132 = vmatprep.subr.mxu0 0.0
        %2133 = vmatpush1.msra.mxu0 0.0
        %2134 = vmatprep.subr.mxu0 0.0
        %2135 = vmatpush1.msra.mxu0 0.0
        %2136 = vmatprep.subr.mxu0 0.0
        %2137 = vmatpush1.msra.mxu0 0.0
        %2138 = vmatprep.subr.mxu0 0.0
        %2139 = vmatpush1.msra.mxu0 0.0
        %2140 = vmatprep.subr.mxu0 0.0
        %2141 = vmatpush1.msra.mxu0 0.0
        %2142 = vmatprep.subr.mxu0 0.0
        %2143 = vmatpush1.msra.mxu0 0.0
        %2144 = vmatprep.subr.mxu0 0.0
        %2145 = vmatpush1.msra.mxu0 0.0
        %2146 = vmatprep.subr.mxu0 0.0
        %2147 = vmatpush1.msra.mxu0 0.0
        %2148 = vmatprep.subr.mxu0 0.0
        %2149 = vmatpush1.msra.mxu0 0.0
        %2150 = vmatprep.mubr.f32.mxu0 0.0
        %2151 = vmatmul.mubr.f32.gmra.mrb[0].mxu0 %v1877
        %v2152 = vpop.f32.mrb[0].mxu0
        %v2153 = vadd.f32 0.0, %v2152
        %v2154 = vpop.f32.mrb[0].mxu0
        %v2155 = vadd.f32 0.0, %v2154
        %2156 = vmatprep.mubr.f32.mxu0 0.0
        %2157 = vmatmul.mubr.f32.gmra.mrb[0].mxu0 %v1878
        %v2158 = vpop.f32.mrb[0].mxu0
        %v2159 = vadd.f32 0.0, %v2158
        %v2160 = vpop.f32.mrb[0].mxu0
        %v2161 = vadd.f32 0.0, %v2160
        %2162 = vmatprep.mubr.f32.mxu0 0.0
        %2163 = vmatmul.mubr.f32.gmra.mrb[0].mxu0 %v1879
        %v2164 = vpop.f32.mrb[0].mxu0
        %v2165 = vadd.f32 0.0, %v2164
        %v2166 = vpop.f32.mrb[0].mxu0
        %v2167 = vadd.f32 0.0, %v2166
        %2168 = vmatprep.mubr.f32.mxu0 0.0
        %2169 = vmatmul.mubr.f32.gmra.mrb[0].mxu0 %v1880
        %v2170 = vpop.f32.mrb[0].mxu0
        %v2171 = vadd.f32 0.0, %v2170
        %v2172 = vpop.f32.mrb[0].mxu0
        %v2173 = vadd.f32 0.0, %v2172
        %2174 = vmatprep.mubr.f32.mxu0 0.0
        %2175 = vmatmul.mubr.f32.gmra.mrb[0].mxu0 %v1881
        %v2176 = vpop.f32.mrb[0].mxu0
        %v2177 = vadd.f32 0.0, %v2176
        %v2178 = vpop.f32.mrb[0].mxu0
        %v2179 = vadd.f32 0.0, %v2178
        %2180 = vmatprep.mubr.f32.mxu0 0.0
        %2181 = vmatmul.mubr.f32.gmra.mrb[0].mxu0 %v1882
        %v2182 = vpop.f32.mrb[0].mxu0
        %v2183 = vadd.f32 0.0, %v2182
        %v2184 = vpop.f32.mrb[0].mxu0
        %v2185 = vadd.f32 0.0, %v2184
        %2186 = vmatprep.mubr.f32.mxu0 0.0
        %2187 = vmatmul.mubr.f32.gmra.mrb[0].mxu0 %v1883
        %v2188 = vpop.f32.mrb[0].mxu0
        %v2189 = vadd.f32 0.0, %v2188
        %v2190 = vpop.f32.mrb[0].mxu0
        %v2191 = vadd.f32 0.0, %v2190
        %2192 = vmatprep.mubr.f32.mxu0 0.0
        %2193 = vmatmul.mubr.f32.gmra.mrb[0].mxu0 %v1884
        %v2194 = vpop.f32.mrb[0].mxu0
        %v2195 = vadd.f32 0.0, %v2194
        %v2196 = vpop.f32.mrb[0].mxu0
        %v2197 = vadd.f32 0.0, %v2196
        %2198 = vmatprep.mubr.f32.mxu0 0.0
        %2199 = vmatmul.mubr.f32.gmra.mrb[0].mxu0 %v1885
        %v2200 = vpop.f32.mrb[0].mxu0
        %v2201 = vadd.f32 0.0, %v2200
        %v2202 = vpop.f32.mrb[0].mxu0
        %v2203 = vadd.f32 0.0, %v2202
        %2204 = vmatprep.mubr.f32.mxu0 0.0
        %2205 = vmatmul.mubr.f32.gmra.mrb[0].mxu0 %v1886
        %v2206 = vpop.f32.mrb[0].mxu0
        %v2207 = vadd.f32 0.0, %v2206
        %v2208 = vpop.f32.mrb[0].mxu0
        %v2209 = vadd.f32 0.0, %v2208
        %2210 = vmatprep.mubr.f32.mxu0 0.0
        %2211 = vmatmul.mubr.f32.gmra.mrb[0].mxu0 %v1887
        %v2212 = vpop.f32.mrb[0].mxu0
        %v2213 = vadd.f32 0.0, %v2212
        %v2214 = vpop.f32.mrb[0].mxu0
        %v2215 = vadd.f32 0.0, %v2214
        %2216 = vmatprep.mubr.f32.mxu0 0.0
        %2217 = vmatmul.mubr.f32.gmra.mrb[0].mxu0 %v1888
        %v2218 = vpop.f32.mrb[0].mxu0
        %v2219 = vadd.f32 0.0, %v2218
        %v2220 = vpop.f32.mrb[0].mxu0
        %v2221 = vadd.f32 0.0, %v2220
        %2222 = vmatprep.mubr.f32.mxu0 0.0
        %2223 = vmatmul.mubr.f32.gmra.mrb[0].mxu0 %v1889
        %v2224 = vpop.f32.mrb[0].mxu0
        %v2225 = vadd.f32 0.0, %v2224
        %v2226 = vpop.f32.mrb[0].mxu0
        %v2227 = vadd.f32 0.0, %v2226
        %2228 = vmatprep.mubr.f32.mxu0 0.0
        %2229 = vmatmul.mubr.f32.gmra.mrb[0].mxu0 %v1890
        %v2230 = vpop.f32.mrb[0].mxu0
        %v2231 = vadd.f32 0.0, %v2230
        %v2232 = vpop.f32.mrb[0].mxu0
        %v2233 = vadd.f32 0.0, %v2232
        %2234 = vmatprep.mubr.f32.mxu0 0.0
        %2235 = vmatmul.mubr.f32.gmra.mrb[0].mxu0 %v1891
        %v2236 = vpop.f32.mrb[0].mxu0
        %v2237 = vadd.f32 0.0, %v2236
        %v2238 = vpop.f32.mrb[0].mxu0
        %v2239 = vadd.f32 0.0, %v2238
        %2240 = vmatprep.mubr.f32.mxu0 0.0
        %2241 = vmatmul.mubr.f32.gmra.mrb[0].mxu0 %v1892
        %v2242 = vpop.f32.mrb[0].mxu0
        %v2243 = vadd.f32 0.0, %v2242
        %v2244 = vpop.f32.mrb[0].mxu0
        %v2245 = vadd.f32 0.0, %v2244
        %2246 = vdwg.mxu0
        %v2247 = vsub.f32 %v1992, %v2155
        %v2248 = vsub.f32 %v1998, %v2161
        %v2249 = vsub.f32 %v2004, %v2167
        %v2250 = vsub.f32 %v2010, %v2173
        %v2251 = vsub.f32 %v2016, %v2179
        %v2252 = vsub.f32 %v2022, %v2185
        %v2253 = vsub.f32 %v2028, %v2191
        %v2254 = vsub.f32 %v2034, %v2197
        %v2255 = vsub.f32 %v2040, %v2203
        %v2256 = vsub.f32 %v2046, %v2209
        %v2257 = vsub.f32 %v2052, %v2215
        %v2258 = vsub.f32 %v2058, %v2221
        %v2259 = vsub.f32 %v2064, %v2227
        %v2260 = vsub.f32 %v2070, %v2233
        %v2261 = vsub.f32 %v2076, %v2239
        %v2262 = vsub.f32 %v2082, %v2245
        %v2263 = vmul.f32 %v2247, 6.1035156e-05
        %v2264 = vmul.f32 %v2248, 6.1035156e-05
        %v2265 = vmul.f32 %v2249, 6.1035156e-05
        %v2266 = vmul.f32 %v2250, 6.1035156e-05
        %v2267 = vmul.f32 %v2251, 6.1035156e-05
        %v2268 = vmul.f32 %v2252, 6.1035156e-05
        %v2269 = vmul.f32 %v2253, 6.1035156e-05
        %v2270 = vmul.f32 %v2254, 6.1035156e-05
        %v2271 = vmul.f32 %v2255, 6.1035156e-05
        %v2272 = vmul.f32 %v2256, 6.1035156e-05
        %v2273 = vmul.f32 %v2257, 6.1035156e-05
        %v2274 = vmul.f32 %v2258, 6.1035156e-05
        %v2275 = vmul.f32 %v2259, 6.1035156e-05
        %v2276 = vmul.f32 %v2260, 6.1035156e-05
        %v2277 = vmul.f32 %v2261, 6.1035156e-05
        %v2278 = vmul.f32 %v2262, 6.1035156e-05
        %2279 = vst [vmem:[%s383] sm:$0xff] %v2263
        %2280 = vst [vmem:[%s383 + $0x8] sm:$0xff] %v2264
        %2281 = vst [vmem:[%s383 + $0x10] sm:$0xff] %v2265
        %2282 = vst [vmem:[%s383 + $0x18] sm:$0xff] %v2266
        %2283 = vst [vmem:[%s383 + $0x20] sm:$0xff] %v2267
        %2284 = vst [vmem:[%s383 + $0x28] sm:$0xff] %v2268
        %2285 = vst [vmem:[%s383 + $0x30] sm:$0xff] %v2269
        %2286 = vst [vmem:[%s383 + $0x38] sm:$0xff] %v2270
        %2287 = vst [vmem:[%s383 + $0x40] sm:$0xff] %v2271
        %2288 = vst [vmem:[%s383 + $0x48] sm:$0xff] %v2272
        %2289 = vst [vmem:[%s383 + $0x50] sm:$0xff] %v2273
        %2290 = vst [vmem:[%s383 + $0x58] sm:$0xff] %v2274
        %2291 = vst [vmem:[%s383 + $0x60] sm:$0xff] %v2275
        %2292 = vst [vmem:[%s383 + $0x68] sm:$0xff] %v2276
        %2293 = vst [vmem:[%s383 + $0x70] sm:$0xff] %v2277
        %2294 = vst [vmem:[%s383 + $0x78] sm:$0xff] %v2278
        %v2295 = vadd.f32 %v2153, %v1994
        %v2296 = vadd.f32 %v2159, %v2000
        %v2297 = vadd.f32 %v2165, %v2006
        %v2298 = vadd.f32 %v2171, %v2012
        %v2299 = vadd.f32 %v2177, %v2018
        %v2300 = vadd.f32 %v2183, %v2024
        %v2301 = vadd.f32 %v2189, %v2030
        %v2302 = vadd.f32 %v2195, %v2036
        %v2303 = vadd.f32 %v2201, %v2042
        %v2304 = vadd.f32 %v2207, %v2048
        %v2305 = vadd.f32 %v2213, %v2054
        %v2306 = vadd.f32 %v2219, %v2060
        %v2307 = vadd.f32 %v2225, %v2066
        %v2308 = vadd.f32 %v2231, %v2072
        %v2309 = vadd.f32 %v2237, %v2078
        %v2310 = vadd.f32 %v2243, %v2084
        %v2311 = vmul.f32 %v2295, 6.1035156e-05
        %v2312 = vmul.f32 %v2296, 6.1035156e-05
        %v2313 = vmul.f32 %v2297, 6.1035156e-05
        %v2314 = vmul.f32 %v2298, 6.1035156e-05
        %v2315 = vmul.f32 %v2299, 6.1035156e-05
        %v2316 = vmul.f32 %v2300, 6.1035156e-05
        %v2317 = vmul.f32 %v2301, 6.1035156e-05
        %v2318 = vmul.f32 %v2302, 6.1035156e-05
        %v2319 = vmul.f32 %v2303, 6.1035156e-05
        %v2320 = vmul.f32 %v2304, 6.1035156e-05
        %v2321 = vmul.f32 %v2305, 6.1035156e-05
        %v2322 = vmul.f32 %v2306, 6.1035156e-05
        %v2323 = vmul.f32 %v2307, 6.1035156e-05
        %v2324 = vmul.f32 %v2308, 6.1035156e-05
        %v2325 = vmul.f32 %v2309, 6.1035156e-05
        %v2326 = vmul.f32 %v2310, 6.1035156e-05
        %2327 = vst [vmem:[%s383 + $0x80] sm:$0xff] %v2311
        %2328 = vst [vmem:[%s383 + $0x88] sm:$0xff] %v2312
        %2329 = vst [vmem:[%s383 + $0x90] sm:$0xff] %v2313
        %2330 = vst [vmem:[%s383 + $0x98] sm:$0xff] %v2314
        %2331 = vst [vmem:[%s383 + $0xa0] sm:$0xff] %v2315
        %2332 = vst [vmem:[%s383 + $0xa8] sm:$0xff] %v2316
        %2333 = vst [vmem:[%s383 + $0xb0] sm:$0xff] %v2317
        %2334 = vst [vmem:[%s383 + $0xb8] sm:$0xff] %v2318
        %2335 = vst [vmem:[%s383 + $0xc0] sm:$0xff] %v2319
        %2336 = vst [vmem:[%s383 + $0xc8] sm:$0xff] %v2320
        %2337 = vst [vmem:[%s383 + $0xd0] sm:$0xff] %v2321
        %2338 = vst [vmem:[%s383 + $0xd8] sm:$0xff] %v2322
        %2339 = vst [vmem:[%s383 + $0xe0] sm:$0xff] %v2323
        %2340 = vst [vmem:[%s383 + $0xe8] sm:$0xff] %v2324
        %2341 = vst [vmem:[%s383 + $0xf0] sm:$0xff] %v2325
        %2342 = vst [vmem:[%s383 + $0xf8] sm:$0xff] %v2326
        %s2343 = sand.u32 %s187, 1
        %s2344 = scalar_lea.sflag [#allocation4], %s2343
        %s2345 = sand.u32 %s187, 1
        %s2346 = smul.addr %s2345, 256
        %s2347 = scalar_lea.vmem [#allocation14], %s2346
        // Predicated region
        $region77: #{tpu_custom_call.1} parent=47 // pred_check
          %p2348 = pneg %p197
        $region78: #{tpu_custom_call.1} parent=47 // pred_check_branch
          %2350 = sbr.rel (%p2348) target = $region80
        $region79: #{tpu_custom_call.1} parent=47 // pred_region
          %s2352 = ssub.s32 4096, 4096
          %2353 = vsyncadd %s2344, %s2352
          %s2354 = smul.addr %s27, 32
          %s2355 = smul.addr %s2354, 128
          %s2356 = scalar_lea.hbm %s7, %s2355
          %s2357 = sshll.u32 %s2347, 4
          %s2358 = int_to_ptr.vmem [resolvable:$true] %s2357
          %2363 = dma.vmem_to_hbm [thread:$0]  %s2358, 4096, %s2356, %s2344, 128, 128, 8
        $region80: #{tpu_custom_call.1} parent=47 // pred_fallthru
          _
      $region48: #{tpu_custom_call.1} parent=5 // pred_fallthru
        _
      %p2364 = scmp.le.s32.totalorder 2, %s22
      // Predicated region
      $region81: #{tpu_custom_call.1} parent=5 // pred_check
        %p2365 = pneg %p2364
      $region82: #{tpu_custom_call.1} parent=5 // pred_check_branch
        %2367 = sbr.rel (%p2365) target = $region84
      $region83: #{tpu_custom_call.1} parent=5 // pred_region
        %s2368 = ssub.s32 %s22, 2
        // Predicated region
        $region85: #{tpu_custom_call.1} parent=83 // pred_check
          %p2369 = pneg %p203
        $region86: #{tpu_custom_call.1} parent=83 // pred_check_branch
          %2371 = sbr.rel (%p2369) target = $region88
        $region87: #{tpu_custom_call.1} parent=83 // pred_region
          %s2372 = sand.u32 %s188, 1
          %s2373 = scalar_lea.sflag [#allocation4], %s2372
          %s2374 = sand.u32 %s188, 1
          %s2375 = smul.addr %s2374, 256
          %s2376 = scalar_lea.vmem [#allocation14], %s2375
          %2377 = dma.done %s2373, 4096
        $region88: #{tpu_custom_call.1} parent=83 // pred_fallthru
          _
      $region84: #{tpu_custom_call.1} parent=5 // pred_fallthru
        _
    $region6: #{tpu_custom_call.1} parent=1 // loop_footer
      %s26 = sadd.s32 1, %s22
    $region7: #{tpu_custom_call.1} parent=1 // loop_footer_branch
      %21 = sbr.rel target = $region3
    $region8: #{tpu_custom_call.1} parent=1 // loop_exit
      _
    %2378 = vsyncpa [#allocation3], 1
    %s2379 = scalar_lea.sflag [#allocation3], 1
    %2380 = vsyncpa %s2379, 1
    %2381 = vsyncpa [#allocation6], 1
    %2382 = vsyncpa [#allocation9], 1
    %2383 = vsyncpa [#allocation12], 1
    %2384 = vsyncpa [#allocation4], 1
    %s2385 = scalar_lea.sflag [#allocation4], 1
    %2386 = vsyncpa %s2385, 1

</llo_original>
